<compile_context>
chip_gen: v6e
topology: v6e:2x2x1
jax: 0.10.0
libtpu: 0.0.40
codegen_flags: <defaults>
</compile_context>

<pallas_src>
import functools

import jax
import jax.numpy as jnp
from jax import lax
from jax.experimental import pallas as pl
from jax.experimental.pallas import tpu as pltpu


def _mha_fused_kernel(x_ref, w_ref, o_ref, *, n_embed, n_heads, head_size):
    # x_ref : (bb, T, C)       a tile of the batch
    # w_ref : (C, 3*H*hs)      [Wk | Wq | Wv], heads laid out along lanes
    # o_ref : (bb, T, H*hs)    heads concatenated along the last dim
    bb, T, C = x_ref.shape
    hhs = n_heads * head_size

    # One wide projection matmul for every (batch, token) row.
    x2d = x_ref[...].reshape(bb * T, C)                     # free merge (T==8)
    kqv = jnp.dot(x2d, w_ref[...],
                  preferred_element_type=jnp.float32)       # (bb*T, 3*H*hs)

    scale = jnp.float32(n_embed) ** jnp.float32(-0.5)
    k = kqv[:, 0 * hhs:1 * hhs].reshape(bb, T, hhs)
    q = (kqv[:, 1 * hhs:2 * hhs] * scale).reshape(bb, T, hhs)   # scale folded in
    v = kqv[:, 2 * hhs:3 * hhs].reshape(bb, T, hhs)

    # Causal mask, built once, shared by all batches & heads.
    row = lax.broadcasted_iota(jnp.int32, (T, T), 0)
    col = lax.broadcasted_iota(jnp.int32, (T, T), 1)
    causal = col <= row                                      # (T, T)
    neg_big = jnp.float32(-1e30)

    outs = []
    for h in range(n_heads):                                 # static, traced once
        lo, hi = h * head_size, (h + 1) * head_size
        qh, kh, vh = q[:, :, lo:hi], k[:, :, lo:hi], v[:, :, lo:hi]  # (bb, T, hs)

        # Batched q @ k^T over the batch dim, contracting hs (no k transpose copy).
        wei = jnp.einsum('btd,bsd->bts', qh, kh,
                         preferred_element_type=jnp.float32)  # (bb, T, T)
        wei = jnp.where(causal, wei, neg_big)

        # Numerically stable softmax; the divide goes to the EUP.
        m = jnp.max(wei, axis=-1, keepdims=True)
        e = jnp.exp(wei - m)
        s = jnp.sum(e, axis=-1, keepdims=True)
        p = e * pl.reciprocal(s, approx=True)

        outs.append(jnp.einsum('bts,bsd->btd', p, vh,
                               preferred_element_type=jnp.float32))  # (bb, T, hs)

    # Concatenate heads along lanes and store in the final layout.
    o_ref[...] = jnp.concatenate(outs, axis=-1).astype(o_ref.dtype)


def multi_head_attention(x, wk, wq, wv, *, block_b=None):
    """x: (B, T, C); wk/wq/wv: (H, C, hs) -> (B, T, H*hs)."""
    B, T, C = x.shape
    H, _, hs = wk.shape
    hhs = H * hs

    if block_b is None:
        block_b = B                      # whole batch per step at these sizes
    assert B % block_b == 0, "batch tile must divide B"

    # Stack per-head weights once: (H, C, hs) -> (C, H*hs); concat K|Q|V on lanes.
    def _flat(w):
        return jnp.transpose(w, (1, 0, 2)).reshape(C, hhs)
    w_all = jnp.concatenate([_flat(wk), _flat(wq), _flat(wv)], axis=1)  # (C, 3*H*hs)

    kernel = functools.partial(
        _mha_fused_kernel, n_embed=C, n_heads=H, head_size=hs)

    out = pl.pallas_call(
        kernel,
        out_shape=jax.ShapeDtypeStruct((B, T, hhs), x.dtype),
        grid_spec=pltpu.PrefetchScalarGridSpec(
            num_scalar_prefetch=0,
            grid=(pl.cdiv(B, block_b),),
            in_specs=[
                pl.BlockSpec((block_b, T, C), lambda b: (b, 0, 0)),
                pl.BlockSpec((C, 3 * hhs), lambda b: (0, 0)),   # resident weights
            ],
            out_specs=pl.BlockSpec((block_b, T, hhs), lambda b: (b, 0, 0)),
        ),
        compiler_params=pltpu.CompilerParams(
            dimension_semantics=("parallel",)),
    )(x, w_all)
    return out


def _reference(x, wk, wq, wv):
    """Pure-JAX reference mirroring the PyTorch module."""
    B, T, C = x.shape
    H, _, hs = wk.shape
    outs = []
    for h in range(H):
        k = x @ wk[h]
        q = x @ wq[h]
        v = x @ wv[h]
        wei = (q @ jnp.swapaxes(k, -2, -1)) * (C ** -0.5)
        mask = jnp.tril(jnp.ones((T, T), dtype=bool))
        wei = jnp.where(mask, wei, -jnp.inf)
        wei = jax.nn.softmax(wei, axis=-1)
        outs.append(wei @ v)
    return jnp.concatenate(outs, axis=-1)


if __name__ == "__main__":
    # Shapes consistent with the module: B=2, T=block_size=8, C=n_embed=32,
    # nheads=4, head_size=8.
    B, T, C = 2, 8, 32
    H, hs = 4, 8

    key = jax.random.PRNGKey(0)
    kx, kk, kq, kv = jax.random.split(key, 4)
    x = jax.random.normal(kx, (B, T, C), dtype=jnp.float32)
    # Per-head projection weights (nn.Linear with bias=False, applied as x @ W).
    wk = jax.random.normal(kk, (H, C, hs), dtype=jnp.float32) * 0.1
    wq = jax.random.normal(kq, (H, C, hs), dtype=jnp.float32) * 0.1
    wv = jax.random.normal(kv, (H, C, hs), dtype=jnp.float32) * 0.1

    out = multi_head_attention(x, wk, wq, wv)
    out = jax.block_until_ready(out)

    ref = _reference(x, wk, wq, wv)
    assert out.shape == (B, T, H * hs), out.shape
    # Tolerance slightly loosened because the softmax divide uses the EUP's
    # approximate reciprocal (pl.reciprocal(approx=True)).
    assert jnp.allclose(out, ref, atol=5e-3, rtol=5e-3), float(
        jnp.max(jnp.abs(out - ref)))

    print("KERNEL_OK")
</pallas_src>

<mosaic_0001>
module attributes {stable_mosaic.version = 11 : i64} {
  func.func @_mha_fused_kernel(%arg0: i32, %arg1: memref<2x8x32xf32, #tpu.memory_space<vmem>>, %arg2: memref<32x96xf32, #tpu.memory_space<vmem>>, %arg3: memref<2x8x32xf32, #tpu.memory_space<vmem>>) attributes {dimension_semantics = [#tpu.dimension_semantics<parallel>], iteration_bounds = array<i64: 1>, scalar_prefetch = 0 : i64, scratch_operands = 0 : i64, tpu.core_type = #tpu.core_type<tc>, window_params = [{transform_indices = @transform_0, window_bounds = array<i64: 2, 8, 32>}, {pipeline_mode = #tpu.pipeline_mode<synchronous>, transform_indices = @transform_1, window_bounds = array<i64: 32, 96>}, {transform_indices = @transform_2, window_bounds = array<i64: 2, 8, 32>}]} {
    %c0 = arith.constant 0 : index
    %c0_0 = arith.constant 0 : index
    %c0_1 = arith.constant 0 : index
    %0 = vector.load %arg1[%c0, %c0_0, %c0_1] : memref<2x8x32xf32, #tpu.memory_space<vmem>>, vector<2x8x32xf32>
    %1 = vector.shape_cast %0 : vector<2x8x32xf32> to vector<16x32xf32>
    %c0_2 = arith.constant 0 : index
    %c0_3 = arith.constant 0 : index
    %2 = vector.load %arg2[%c0_2, %c0_3] : memref<32x96xf32, #tpu.memory_space<vmem>>, vector<32x96xf32>
    %cst = arith.constant dense<0.000000e+00> : vector<16x96xf32>
    %3 = tpu.matmul %1, %2, %cst {dimension_numbers = #tpu.dot_dimension_numbers<[1], [0], [0], [1], [0, 0, 1, 1], [], []>} : vector<16x32xf32>, vector<32x96xf32>, vector<16x96xf32> -> vector<16x96xf32>
    %cst_4 = arith.constant 3.200000e+01 : f32
    %cst_5 = arith.constant -5.000000e-01 : f32
    %4 = math.powf %cst_4, %cst_5 : f32
    %5 = vector.extract_strided_slice %3 {offsets = [0, 0], sizes = [16, 32], strides = [1, 1]} : vector<16x96xf32> to vector<16x32xf32>
    %6 = vector.shape_cast %5 : vector<16x32xf32> to vector<2x8x32xf32>
    %7 = vector.extract_strided_slice %3 {offsets = [0, 32], sizes = [16, 32], strides = [1, 1]} : vector<16x96xf32> to vector<16x32xf32>
    %8 = vector.broadcast %4 : f32 to vector<16x32xf32>
    %9 = arith.mulf %7, %8 : vector<16x32xf32>
    %10 = vector.shape_cast %9 : vector<16x32xf32> to vector<2x8x32xf32>
    %11 = vector.extract_strided_slice %3 {offsets = [0, 64], sizes = [16, 32], strides = [1, 1]} : vector<16x96xf32> to vector<16x32xf32>
    %12 = vector.shape_cast %11 : vector<16x32xf32> to vector<2x8x32xf32>
    %13 = tpu.iota {dimensions = array<i32: 0>} : vector<8x8xi32>
    %14 = tpu.iota {dimensions = array<i32: 1>} : vector<8x8xi32>
    %15 = arith.cmpi sle, %14, %13 : vector<8x8xi32>
    %16 = vector.extract_strided_slice %10 {offsets = [0, 0, 0], sizes = [2, 8, 8], strides = [1, 1, 1]} : vector<2x8x32xf32> to vector<2x8x8xf32>
    %17 = vector.extract_strided_slice %6 {offsets = [0, 0, 0], sizes = [2, 8, 8], strides = [1, 1, 1]} : vector<2x8x32xf32> to vector<2x8x8xf32>
    %18 = vector.extract_strided_slice %12 {offsets = [0, 0, 0], sizes = [2, 8, 8], strides = [1, 1, 1]} : vector<2x8x32xf32> to vector<2x8x8xf32>
    "tpu.trace_start"() <{level = 10 : i32, message = "btd,bsd->bts"}> : () -> ()
    %cst_6 = arith.constant dense<0.000000e+00> : vector<2x8x8xf32>
    %19 = tpu.matmul %16, %17, %cst_6 {dimension_numbers = #tpu.dot_dimension_numbers<[2], [2], [1], [1], [0, 0, 0, 1, 1, 1], [0], [0]>} : vector<2x8x8xf32>, vector<2x8x8xf32>, vector<2x8x8xf32> -> vector<2x8x8xf32>
    %cst_7 = arith.constant -1.000000e+30 : f32
    "tpu.trace_stop"() : () -> ()
    %20 = vector.shape_cast %15 : vector<8x8xi1> to vector<1x8x8xi1>
    %21 = vector.broadcast %20 : vector<1x8x8xi1> to vector<2x8x8xi1>
    %22 = vector.broadcast %cst_7 : f32 to vector<2x8x8xf32>
    %23 = arith.select %21, %19, %22 : vector<2x8x8xi1>, vector<2x8x8xf32>
    %cst_8 = arith.constant dense<0xFF800000> : vector<2x8xf32>
    %24 = vector.multi_reduction <maximumf>, %23, %cst_8 [2] : vector<2x8x8xf32> to vector<2x8xf32>
    %25 = vector.shape_cast %24 : vector<2x8xf32> to vector<2x8x1xf32>
    %26 = vector.broadcast %25 : vector<2x8x1xf32> to vector<2x8x8xf32>
    %27 = arith.subf %23, %26 : vector<2x8x8xf32>
    %28 = math.exp %27 : vector<2x8x8xf32>
    %cst_9 = arith.constant dense<0.000000e+00> : vector<2x8xf32>
    %29 = vector.multi_reduction <add>, %28, %cst_9 [2] : vector<2x8x8xf32> to vector<2x8xf32>
    %30 = vector.shape_cast %29 : vector<2x8xf32> to vector<2x8x1xf32>
    %31 = tpu.reciprocal %30 {approx = true} : vector<2x8x1xf32> -> vector<2x8x1xf32>
    %32 = vector.broadcast %31 : vector<2x8x1xf32> to vector<2x8x8xf32>
    %33 = arith.mulf %28, %32 : vector<2x8x8xf32>
    "tpu.trace_start"() <{level = 10 : i32, message = "bts,bsd->btd"}> : () -> ()
    %cst_10 = arith.constant dense<0.000000e+00> : vector<2x8x8xf32>
    %34 = tpu.matmul %33, %18, %cst_10 {dimension_numbers = #tpu.dot_dimension_numbers<[2], [1], [1], [2], [0, 0, 0, 1, 1, 2], [0], [0]>} : vector<2x8x8xf32>, vector<2x8x8xf32>, vector<2x8x8xf32> -> vector<2x8x8xf32>
    "tpu.trace_stop"() : () -> ()
    %35 = vector.extract_strided_slice %10 {offsets = [0, 0, 8], sizes = [2, 8, 8], strides = [1, 1, 1]} : vector<2x8x32xf32> to vector<2x8x8xf32>
    %36 = vector.extract_strided_slice %6 {offsets = [0, 0, 8], sizes = [2, 8, 8], strides = [1, 1, 1]} : vector<2x8x32xf32> to vector<2x8x8xf32>
    %37 = vector.extract_strided_slice %12 {offsets = [0, 0, 8], sizes = [2, 8, 8], strides = [1, 1, 1]} : vector<2x8x32xf32> to vector<2x8x8xf32>
    "tpu.trace_start"() <{level = 10 : i32, message = "btd,bsd->bts"}> : () -> ()
    %cst_11 = arith.constant dense<0.000000e+00> : vector<2x8x8xf32>
    %38 = tpu.matmul %35, %36, %cst_11 {dimension_numbers = #tpu.dot_dimension_numbers<[2], [2], [1], [1], [0, 0, 0, 1, 1, 1], [0], [0]>} : vector<2x8x8xf32>, vector<2x8x8xf32>, vector<2x8x8xf32> -> vector<2x8x8xf32>
    %cst_12 = arith.constant -1.000000e+30 : f32
    "tpu.trace_stop"() : () -> ()
    %39 = vector.shape_cast %15 : vector<8x8xi1> to vector<1x8x8xi1>
    %40 = vector.broadcast %39 : vector<1x8x8xi1> to vector<2x8x8xi1>
    %41 = vector.broadcast %cst_12 : f32 to vector<2x8x8xf32>
    %42 = arith.select %40, %38, %41 : vector<2x8x8xi1>, vector<2x8x8xf32>
    %cst_13 = arith.constant dense<0xFF800000> : vector<2x8xf32>
    %43 = vector.multi_reduction <maximumf>, %42, %cst_13 [2] : vector<2x8x8xf32> to vector<2x8xf32>
    %44 = vector.shape_cast %43 : vector<2x8xf32> to vector<2x8x1xf32>
    %45 = vector.broadcast %44 : vector<2x8x1xf32> to vector<2x8x8xf32>
    %46 = arith.subf %42, %45 : vector<2x8x8xf32>
    %47 = math.exp %46 : vector<2x8x8xf32>
    %cst_14 = arith.constant dense<0.000000e+00> : vector<2x8xf32>
    %48 = vector.multi_reduction <add>, %47, %cst_14 [2] : vector<2x8x8xf32> to vector<2x8xf32>
    %49 = vector.shape_cast %48 : vector<2x8xf32> to vector<2x8x1xf32>
    %50 = tpu.reciprocal %49 {approx = true} : vector<2x8x1xf32> -> vector<2x8x1xf32>
    %51 = vector.broadcast %50 : vector<2x8x1xf32> to vector<2x8x8xf32>
    %52 = arith.mulf %47, %51 : vector<2x8x8xf32>
    "tpu.trace_start"() <{level = 10 : i32, message = "bts,bsd->btd"}> : () -> ()
    %cst_15 = arith.constant dense<0.000000e+00> : vector<2x8x8xf32>
    %53 = tpu.matmul %52, %37, %cst_15 {dimension_numbers = #tpu.dot_dimension_numbers<[2], [1], [1], [2], [0, 0, 0, 1, 1, 2], [0], [0]>} : vector<2x8x8xf32>, vector<2x8x8xf32>, vector<2x8x8xf32> -> vector<2x8x8xf32>
    "tpu.trace_stop"() : () -> ()
    %54 = vector.extract_strided_slice %10 {offsets = [0, 0, 16], sizes = [2, 8, 8], strides = [1, 1, 1]} : vector<2x8x32xf32> to vector<2x8x8xf32>
    %55 = vector.extract_strided_slice %6 {offsets = [0, 0, 16], sizes = [2, 8, 8], strides = [1, 1, 1]} : vector<2x8x32xf32> to vector<2x8x8xf32>
    %56 = vector.extract_strided_slice %12 {offsets = [0, 0, 16], sizes = [2, 8, 8], strides = [1, 1, 1]} : vector<2x8x32xf32> to vector<2x8x8xf32>
    "tpu.trace_start"() <{level = 10 : i32, message = "btd,bsd->bts"}> : () -> ()
    %cst_16 = arith.constant dense<0.000000e+00> : vector<2x8x8xf32>
    %57 = tpu.matmul %54, %55, %cst_16 {dimension_numbers = #tpu.dot_dimension_numbers<[2], [2], [1], [1], [0, 0, 0, 1, 1, 1], [0], [0]>} : vector<2x8x8xf32>, vector<2x8x8xf32>, vector<2x8x8xf32> -> vector<2x8x8xf32>
    %cst_17 = arith.constant -1.000000e+30 : f32
    "tpu.trace_stop"() : () -> ()
    %58 = vector.shape_cast %15 : vector<8x8xi1> to vector<1x8x8xi1>
    %59 = vector.broadcast %58 : vector<1x8x8xi1> to vector<2x8x8xi1>
    %60 = vector.broadcast %cst_17 : f32 to vector<2x8x8xf32>
    %61 = arith.select %59, %57, %60 : vector<2x8x8xi1>, vector<2x8x8xf32>
    %cst_18 = arith.constant dense<0xFF800000> : vector<2x8xf32>
    %62 = vector.multi_reduction <maximumf>, %61, %cst_18 [2] : vector<2x8x8xf32> to vector<2x8xf32>
    %63 = vector.shape_cast %62 : vector<2x8xf32> to vector<2x8x1xf32>
    %64 = vector.broadcast %63 : vector<2x8x1xf32> to vector<2x8x8xf32>
    %65 = arith.subf %61, %64 : vector<2x8x8xf32>
    %66 = math.exp %65 : vector<2x8x8xf32>
    %cst_19 = arith.constant dense<0.000000e+00> : vector<2x8xf32>
    %67 = vector.multi_reduction <add>, %66, %cst_19 [2] : vector<2x8x8xf32> to vector<2x8xf32>
    %68 = vector.shape_cast %67 : vector<2x8xf32> to vector<2x8x1xf32>
    %69 = tpu.reciprocal %68 {approx = true} : vector<2x8x1xf32> -> vector<2x8x1xf32>
    %70 = vector.broadcast %69 : vector<2x8x1xf32> to vector<2x8x8xf32>
    %71 = arith.mulf %66, %70 : vector<2x8x8xf32>
    "tpu.trace_start"() <{level = 10 : i32, message = "bts,bsd->btd"}> : () -> ()
    %cst_20 = arith.constant dense<0.000000e+00> : vector<2x8x8xf32>
    %72 = tpu.matmul %71, %56, %cst_20 {dimension_numbers = #tpu.dot_dimension_numbers<[2], [1], [1], [2], [0, 0, 0, 1, 1, 2], [0], [0]>} : vector<2x8x8xf32>, vector<2x8x8xf32>, vector<2x8x8xf32> -> vector<2x8x8xf32>
    "tpu.trace_stop"() : () -> ()
    %73 = vector.extract_strided_slice %10 {offsets = [0, 0, 24], sizes = [2, 8, 8], strides = [1, 1, 1]} : vector<2x8x32xf32> to vector<2x8x8xf32>
    %74 = vector.extract_strided_slice %6 {offsets = [0, 0, 24], sizes = [2, 8, 8], strides = [1, 1, 1]} : vector<2x8x32xf32> to vector<2x8x8xf32>
    %75 = vector.extract_strided_slice %12 {offsets = [0, 0, 24], sizes = [2, 8, 8], strides = [1, 1, 1]} : vector<2x8x32xf32> to vector<2x8x8xf32>
    "tpu.trace_start"() <{level = 10 : i32, message = "btd,bsd->bts"}> : () -> ()
    %cst_21 = arith.constant dense<0.000000e+00> : vector<2x8x8xf32>
    %76 = tpu.matmul %73, %74, %cst_21 {dimension_numbers = #tpu.dot_dimension_numbers<[2], [2], [1], [1], [0, 0, 0, 1, 1, 1], [0], [0]>} : vector<2x8x8xf32>, vector<2x8x8xf32>, vector<2x8x8xf32> -> vector<2x8x8xf32>
    %cst_22 = arith.constant -1.000000e+30 : f32
    "tpu.trace_stop"() : () -> ()
    %77 = vector.shape_cast %15 : vector<8x8xi1> to vector<1x8x8xi1>
    %78 = vector.broadcast %77 : vector<1x8x8xi1> to vector<2x8x8xi1>
    %79 = vector.broadcast %cst_22 : f32 to vector<2x8x8xf32>
    %80 = arith.select %78, %76, %79 : vector<2x8x8xi1>, vector<2x8x8xf32>
    %cst_23 = arith.constant dense<0xFF800000> : vector<2x8xf32>
    %81 = vector.multi_reduction <maximumf>, %80, %cst_23 [2] : vector<2x8x8xf32> to vector<2x8xf32>
    %82 = vector.shape_cast %81 : vector<2x8xf32> to vector<2x8x1xf32>
    %83 = vector.broadcast %82 : vector<2x8x1xf32> to vector<2x8x8xf32>
    %84 = arith.subf %80, %83 : vector<2x8x8xf32>
    %85 = math.exp %84 : vector<2x8x8xf32>
    %cst_24 = arith.constant dense<0.000000e+00> : vector<2x8xf32>
    %86 = vector.multi_reduction <add>, %85, %cst_24 [2] : vector<2x8x8xf32> to vector<2x8xf32>
    %87 = vector.shape_cast %86 : vector<2x8xf32> to vector<2x8x1xf32>
    %88 = tpu.reciprocal %87 {approx = true} : vector<2x8x1xf32> -> vector<2x8x1xf32>
    %89 = vector.broadcast %88 : vector<2x8x1xf32> to vector<2x8x8xf32>
    %90 = arith.mulf %85, %89 : vector<2x8x8xf32>
    "tpu.trace_start"() <{level = 10 : i32, message = "bts,bsd->btd"}> : () -> ()
    %cst_25 = arith.constant dense<0.000000e+00> : vector<2x8x8xf32>
    %91 = tpu.matmul %90, %75, %cst_25 {dimension_numbers = #tpu.dot_dimension_numbers<[2], [1], [1], [2], [0, 0, 0, 1, 1, 2], [0], [0]>} : vector<2x8x8xf32>, vector<2x8x8xf32>, vector<2x8x8xf32> -> vector<2x8x8xf32>
    "tpu.trace_stop"() : () -> ()
    %92 = tpu.concatenate %34, %53, %72, %91 in 2 : vector<2x8x8xf32>, vector<2x8x8xf32>, vector<2x8x8xf32>, vector<2x8x8xf32> -> vector<2x8x32xf32>
    %c0_26 = arith.constant 0 : index
    %c0_27 = arith.constant 0 : index
    %c0_28 = arith.constant 0 : index
    %93 = vector.load %arg3[%c0_26, %c0_27, %c0_28] : memref<2x8x32xf32, #tpu.memory_space<vmem>>, vector<2x8x32xf32>
    tpu.vector_store %arg3[%c0_26, %c0_27, %c0_28], %92 {strides = array<i32>} : memref<2x8x32xf32, #tpu.memory_space<vmem>>, vector<2x8x32xf32>,
    return
  }
  func.func @transform_0(%arg0: i32) -> (i32, i32, i32) {
    %c0_i32 = arith.constant 0 : i32
    %c0_i32_0 = arith.constant 0 : i32
    %c0_i32_1 = arith.constant 0 : i32
    return %arg0, %c0_i32, %c0_i32_0 : i32, i32, i32
  }
  func.func @transform_1(%arg0: i32) -> (i32, i32) {
    %c0_i32 = arith.constant 0 : i32
    %c0_i32_0 = arith.constant 0 : i32
    %c0_i32_1 = arith.constant 0 : i32
    return %c0_i32, %c0_i32_0 : i32, i32
  }
  func.func @transform_2(%arg0: i32) -> (i32, i32, i32) {
    %c0_i32 = arith.constant 0 : i32
    %c0_i32_0 = arith.constant 0 : i32
    %c0_i32_1 = arith.constant 0 : i32
    return %arg0, %c0_i32, %c0_i32_0 : i32, i32, i32
  }
}

</mosaic_0001>

<llo_original>
// kernel: tpu_custom_call.1
$region0: #{tpu_custom_call.1}
  #allocation0 [shape = 'u32[]', space=smem, size = 0x4, offset = 0x4, fixed_abs, tag = 'smem constant byte address 0x4 - core index']
  #allocation1 [shape = 'u32[144,128]{1,0:T(1,128)}', space=vmem, size = 0x12000, scoped, tag = 'internal scratch']
  %s0 = inlined_call_operand.hbm [shape: f32[2,8,32], index: 0, kind: input, shape index: {}]
  %s1 = inlined_call_operand.hbm [shape: f32[32,96], index: 1, kind: input, shape index: {}]
  %s2 = inlined_call_operand.hbm [shape: f32[2,8,32], index: 2, kind: output, shape index: {}]
  %s3 = sld [smem:[#allocation0]]
  $region26: #{tpu_custom_call.1} parent=0
    _
  %s5 = ssub.s32 1, %s3
  %s6 = scalar_select 0, %s5, %s3
  $region1: #{tpu_custom_call.1} parent=0
    #allocation2 [shape = 'u8[8192]{0}', space=vmem, size = 0x2000, scoped, tag = 'input window, operand 0, single buffered']
    #allocation3 [shape = 's32[1]{0}', space=sflag, size = 0x4, scoped, tag = 'scoped memory for tpu_custom_call.1']
    #allocation4 [shape = 's32[1]{0}', space=sflag, size = 0x4, scoped, tag = 'scoped memory for tpu_custom_call.1']
    #allocation5 [shape = 'u8[16384]{0}', space=vmem, size = 0x4000, scoped, tag = 'input window, operand 1, single buffered']
    #allocation6 [shape = 's32[1]{0}', space=sflag, size = 0x4, scoped, tag = 'scoped memory for tpu_custom_call.1']
    #allocation7 [shape = 'u8[8192]{0}', space=vmem, size = 0x2000, scoped, tag = 'output window, operand 0, single buffered']
    %7 = vsyncpa [#allocation3], 0
    %8 = vsyncpa [#allocation6], 0
    %9 = vsyncpa [#allocation4], 0
    // Predicated region
    $region2: #{tpu_custom_call.1} parent=1 // pred_check
      _
    $region3: #{tpu_custom_call.1} parent=1 // pred_check_branch
      %11 = sbr.rel (0) target = $region5
    $region4: #{tpu_custom_call.1} parent=1 // pred_region
      %s13 = ssub.s32 256, 256
      %14 = vsyncadd [#allocation3], %s13
      %s15 = sshll.u32 [#allocation2], 4
      %s16 = int_to_ptr.vmem [resolvable:$true] %s15
      %21 = dma.hbm_to_vmem [thread:$0]  %s0, 256, %s16, [#allocation3], 128, 128, 8
    $region5: #{tpu_custom_call.1} parent=1 // pred_fallthru
      _
    // Predicated region
    $region6: #{tpu_custom_call.1} parent=1 // pred_check
      _
    $region7: #{tpu_custom_call.1} parent=1 // pred_check_branch
      %23 = sbr.rel (0) target = $region9
    $region8: #{tpu_custom_call.1} parent=1 // pred_region
      %s25 = ssub.s32 512, 512
      %26 = vsyncadd [#allocation6], %s25
      %s27 = sshll.u32 [#allocation5], 4
      %s28 = int_to_ptr.vmem [resolvable:$true] %s27
      %33 = dma.hbm_to_vmem [thread:$0]  %s1, 512, %s28, [#allocation6], 128, 128, 8
    $region9: #{tpu_custom_call.1} parent=1 // pred_fallthru
      _
    // Predicated region
    $region10: #{tpu_custom_call.1} parent=1 // pred_check
      _
    $region11: #{tpu_custom_call.1} parent=1 // pred_check_branch
      %35 = sbr.rel (0) target = $region13
    $region12: #{tpu_custom_call.1} parent=1 // pred_region
      %36 = dma.done [#allocation3], 256
    $region13: #{tpu_custom_call.1} parent=1 // pred_fallthru
      _
    // Predicated region
    $region14: #{tpu_custom_call.1} parent=1 // pred_check
      _
    $region15: #{tpu_custom_call.1} parent=1 // pred_check_branch
      %38 = sbr.rel (0) target = $region17
    $region16: #{tpu_custom_call.1} parent=1 // pred_region
      %39 = dma.done [#allocation6], 512
    $region17: #{tpu_custom_call.1} parent=1 // pred_fallthru
      _
    %v40 = vld [vmem:[#allocation2] sm:$0xff]
    %v41 = vld [vmem:[#allocation2 + $0x8] sm:$0xff]
    %v42 = vld [vmem:[#allocation5] sm:$0xff]
    %v43 = vld [vmem:[#allocation5 + $0x8] sm:$0xff]
    %v44 = vld [vmem:[#allocation5 + $0x10] sm:$0xff]
    %v45 = vld [vmem:[#allocation5 + $0x18] sm:$0xff]
    %vm46 = vcmask 261120
    %v48 = vsel %vm46, %v40, 0
    %v51 = vsel %vm46, %v41, 0
    %53 = vmatprep.subr.mxu0 0.0
    %54 = vmatpush1.msra.mxu0 0.0
    %55 = vmatprep.subr.mxu0 0.0
    %56 = vmatpush1.msra.mxu0 0.0
    %57 = vmatprep.subr.mxu0 0.0
    %58 = vmatpush1.msra.mxu0 0.0
    %59 = vmatprep.subr.mxu0 0.0
    %60 = vmatpush1.msra.mxu0 0.0
    %61 = vmatprep.subr.mxu0 0.0
    %62 = vmatpush1.msra.mxu0 0.0
    %63 = vmatprep.subr.mxu0 0.0
    %64 = vmatpush1.msra.mxu0 0.0
    %65 = vmatprep.subr.mxu0 0.0
    %66 = vmatpush1.msra.mxu0 0.0
    %67 = vmatprep.subr.mxu0 0.0
    %68 = vmatpush1.msra.mxu0 0.0
    %69 = vmatprep.subr.mxu0 0.0
    %70 = vmatpush1.msra.mxu0 0.0
    %71 = vmatprep.subr.mxu0 0.0
    %72 = vmatpush1.msra.mxu0 0.0
    %73 = vmatprep.subr.mxu0 0.0
    %74 = vmatpush1.msra.mxu0 0.0
    %75 = vmatprep.subr.mxu0 0.0
    %76 = vmatpush1.msra.mxu0 0.0
    %77 = vmatprep.subr.mxu0 0.0
    %78 = vmatpush1.msra.mxu0 %v45
    %79 = vmatprep.subr.mxu0 0.0
    %80 = vmatpush1.msra.mxu0 %v44
    %81 = vmatprep.subr.mxu0 0.0
    %82 = vmatpush1.msra.mxu0 %v43
    %83 = vmatprep.subr.mxu0 0.0
    %84 = vmatpush1.msra.mxu0 %v42
    %85 = vmatprep.subr.mxu0 0.0
    %86 = vmatpush2.msra.mxu0 0.0
    %87 = vmatprep.subr.mxu0 0.0
    %88 = vmatpush2.msra.mxu0 0.0
    %89 = vmatprep.subr.mxu0 0.0
    %90 = vmatpush2.msra.mxu0 0.0
    %91 = vmatprep.subr.mxu0 0.0
    %92 = vmatpush2.msra.mxu0 0.0
    %93 = vmatprep.subr.mxu0 0.0
    %94 = vmatpush2.msra.mxu0 0.0
    %95 = vmatprep.subr.mxu0 0.0
    %96 = vmatpush2.msra.mxu0 0.0
    %97 = vmatprep.subr.mxu0 0.0
    %98 = vmatpush2.msra.mxu0 0.0
    %99 = vmatprep.subr.mxu0 0.0
    %100 = vmatpush2.msra.mxu0 0.0
    %101 = vmatprep.subr.mxu0 0.0
    %102 = vmatpush2.msra.mxu0 0.0
    %103 = vmatprep.subr.mxu0 0.0
    %104 = vmatpush2.msra.mxu0 0.0
    %105 = vmatprep.subr.mxu0 0.0
    %106 = vmatpush2.msra.mxu0 0.0
    %107 = vmatprep.subr.mxu0 0.0
    %108 = vmatpush2.msra.mxu0 0.0
    %109 = vmatprep.subr.mxu0 0.0
    %110 = vmatpush2.msra.mxu0 0.0
    %111 = vmatprep.subr.mxu0 0.0
    %112 = vmatpush2.msra.mxu0 0.0
    %113 = vmatprep.subr.mxu0 0.0
    %114 = vmatpush2.msra.mxu0 0.0
    %115 = vmatprep.subr.mxu0 0.0
    %116 = vmatpush2.msra.mxu0 0.0
    %117 = vmatprep.mubr.f32.mxu0 0.0
    %118 = vmatmul.mubr.f32.gmra.mxu0 %v48
    %v119 = vpop.f32.mrf.mxu0
    %v120 = vadd.f32 0.0, %v119
    %v121 = vpop.f32.mrf.mxu0
    %122 = vmatprep.mubr.f32.mxu0 0.0
    %123 = vmatmul.mubr.f32.gmra.mxu0 %v51
    %v124 = vpop.f32.mrf.mxu0
    %v125 = vadd.f32 0.0, %v124
    %v126 = vpop.f32.mrf.mxu0
    %127 = vdwg.mxu0
    %v128 = vmul.f32 %v120, 0.17677669
    %v129 = vmul.f32 %v125, 0.17677669
    %v130 = vlaneseq
    %v131 = vshrl.u32 %v130, 7
    %v132 = vlaneseq
    %v133 = vand.u32 %v132, 127
    %vm134 = vcmp.le.s32.totalorder %v133, %v131
    %136 = vrot.lane.b32.xlu0 %v128, 96
    %v137 = vpop.permute.xlu0 %136
    %vm138 = vcmask 64512
    %v139 = vsel %vm138, %v137, 0
    %v142 = vsel %vm138, %v120, 0
    %144 = vmatprep.subr.mxu0 0.0
    %145 = vmatpush1.xpose.msra.mxu0 0.0
    %146 = vmatprep.subr.mxu0 0.0
    %147 = vmatpush1.xpose.msra.mxu0 0.0
    %148 = vmatprep.subr.mxu0 0.0
    %149 = vmatpush1.xpose.msra.mxu0 0.0
    %150 = vmatprep.subr.mxu0 0.0
    %151 = vmatpush1.xpose.msra.mxu0 0.0
    %152 = vmatprep.subr.mxu0 0.0
    %153 = vmatpush1.xpose.msra.mxu0 0.0
    %154 = vmatprep.subr.mxu0 0.0
    %155 = vmatpush1.xpose.msra.mxu0 0.0
    %156 = vmatprep.subr.mxu0 0.0
    %157 = vmatpush1.xpose.msra.mxu0 0.0
    %158 = vmatprep.subr.mxu0 0.0
    %159 = vmatpush1.xpose.msra.mxu0 0.0
    %160 = vmatprep.subr.mxu0 0.0
    %161 = vmatpush1.xpose.msra.mxu0 0.0
    %162 = vmatprep.subr.mxu0 0.0
    %163 = vmatpush1.xpose.msra.mxu0 0.0
    %164 = vmatprep.subr.mxu0 0.0
    %165 = vmatpush1.xpose.msra.mxu0 0.0
    %166 = vmatprep.subr.mxu0 0.0
    %167 = vmatpush1.xpose.msra.mxu0 0.0
    %168 = vmatprep.subr.mxu0 0.0
    %169 = vmatpush1.xpose.msra.mxu0 0.0
    %170 = vmatprep.subr.mxu0 0.0
    %171 = vmatpush1.xpose.msra.mxu0 0.0
    %172 = vmatprep.subr.mxu0 0.0
    %173 = vmatpush1.xpose.msra.mxu0 0.0
    %174 = vmatprep.subr.mxu0 0.0
    %175 = vmatpush1.xpose.msra.mxu0 %v142
    %176 = vmatprep.subr.mxu0 0.0
    %177 = vmatpush2.xpose.msra.mxu0 0.0
    %178 = vmatprep.subr.mxu0 0.0
    %179 = vmatpush2.xpose.msra.mxu0 0.0
    %180 = vmatprep.subr.mxu0 0.0
    %181 = vmatpush2.xpose.msra.mxu0 0.0
    %182 = vmatprep.subr.mxu0 0.0
    %183 = vmatpush2.xpose.msra.mxu0 0.0
    %184 = vmatprep.subr.mxu0 0.0
    %185 = vmatpush2.xpose.msra.mxu0 0.0
    %186 = vmatprep.subr.mxu0 0.0
    %187 = vmatpush2.xpose.msra.mxu0 0.0
    %188 = vmatprep.subr.mxu0 0.0
    %189 = vmatpush2.xpose.msra.mxu0 0.0
    %190 = vmatprep.subr.mxu0 0.0
    %191 = vmatpush2.xpose.msra.mxu0 0.0
    %192 = vmatprep.subr.mxu0 0.0
    %193 = vmatpush2.xpose.msra.mxu0 0.0
    %194 = vmatprep.subr.mxu0 0.0
    %195 = vmatpush2.xpose.msra.mxu0 0.0
    %196 = vmatprep.subr.mxu0 0.0
    %197 = vmatpush2.xpose.msra.mxu0 0.0
    %198 = vmatprep.subr.mxu0 0.0
    %199 = vmatpush2.xpose.msra.mxu0 0.0
    %200 = vmatprep.subr.mxu0 0.0
    %201 = vmatpush2.xpose.msra.mxu0 0.0
    %202 = vmatprep.subr.mxu0 0.0
    %203 = vmatpush2.xpose.msra.mxu0 0.0
    %204 = vmatprep.subr.mxu0 0.0
    %205 = vmatpush2.xpose.msra.mxu0 0.0
    %206 = vmatprep.subr.mxu0 0.0
    %207 = vmatpush2.xpose.msra.mxu0 0.0
    %208 = vmatprep.mubr.f32.mxu0 0.0
    %209 = vmatmul.mubr.f32.gmra.mxu0 %v139
    %v210 = vpop.f32.mrf.mxu0
    %v211 = vadd.f32 0.0, %v210
    %v212 = vpop.f32.mrf.mxu0
    %213 = vdwg.mxu0
    %215 = vrot.lane.b32.xlu0 %v129, 96
    %v216 = vpop.permute.xlu0 %215
    %v217 = vsel %vm138, %v216, 0
    %v220 = vsel %vm138, %v125, 0
    %222 = vmatprep.subr.mxu0 0.0
    %223 = vmatpush1.xpose.msra.mxu0 0.0
    %224 = vmatprep.subr.mxu0 0.0
    %225 = vmatpush1.xpose.msra.mxu0 0.0
    %226 = vmatprep.subr.mxu0 0.0
    %227 = vmatpush1.xpose.msra.mxu0 0.0
    %228 = vmatprep.subr.mxu0 0.0
    %229 = vmatpush1.xpose.msra.mxu0 0.0
    %230 = vmatprep.subr.mxu0 0.0
    %231 = vmatpush1.xpose.msra.mxu0 0.0
    %232 = vmatprep.subr.mxu0 0.0
    %233 = vmatpush1.xpose.msra.mxu0 0.0
    %234 = vmatprep.subr.mxu0 0.0
    %235 = vmatpush1.xpose.msra.mxu0 0.0
    %236 = vmatprep.subr.mxu0 0.0
    %237 = vmatpush1.xpose.msra.mxu0 0.0
    %238 = vmatprep.subr.mxu0 0.0
    %239 = vmatpush1.xpose.msra.mxu0 0.0
    %240 = vmatprep.subr.mxu0 0.0
    %241 = vmatpush1.xpose.msra.mxu0 0.0
    %242 = vmatprep.subr.mxu0 0.0
    %243 = vmatpush1.xpose.msra.mxu0 0.0
    %244 = vmatprep.subr.mxu0 0.0
    %245 = vmatpush1.xpose.msra.mxu0 0.0
    %246 = vmatprep.subr.mxu0 0.0
    %247 = vmatpush1.xpose.msra.mxu0 0.0
    %248 = vmatprep.subr.mxu0 0.0
    %249 = vmatpush1.xpose.msra.mxu0 0.0
    %250 = vmatprep.subr.mxu0 0.0
    %251 = vmatpush1.xpose.msra.mxu0 0.0
    %252 = vmatprep.subr.mxu0 0.0
    %253 = vmatpush1.xpose.msra.mxu0 %v220
    %254 = vmatprep.subr.mxu0 0.0
    %255 = vmatpush2.xpose.msra.mxu0 0.0
    %256 = vmatprep.subr.mxu0 0.0
    %257 = vmatpush2.xpose.msra.mxu0 0.0
    %258 = vmatprep.subr.mxu0 0.0
    %259 = vmatpush2.xpose.msra.mxu0 0.0
    %260 = vmatprep.subr.mxu0 0.0
    %261 = vmatpush2.xpose.msra.mxu0 0.0
    %262 = vmatprep.subr.mxu0 0.0
    %263 = vmatpush2.xpose.msra.mxu0 0.0
    %264 = vmatprep.subr.mxu0 0.0
    %265 = vmatpush2.xpose.msra.mxu0 0.0
    %266 = vmatprep.subr.mxu0 0.0
    %267 = vmatpush2.xpose.msra.mxu0 0.0
    %268 = vmatprep.subr.mxu0 0.0
    %269 = vmatpush2.xpose.msra.mxu0 0.0
    %270 = vmatprep.subr.mxu0 0.0
    %271 = vmatpush2.xpose.msra.mxu0 0.0
    %272 = vmatprep.subr.mxu0 0.0
    %273 = vmatpush2.xpose.msra.mxu0 0.0
    %274 = vmatprep.subr.mxu0 0.0
    %275 = vmatpush2.xpose.msra.mxu0 0.0
    %276 = vmatprep.subr.mxu0 0.0
    %277 = vmatpush2.xpose.msra.mxu0 0.0
    %278 = vmatprep.subr.mxu0 0.0
    %279 = vmatpush2.xpose.msra.mxu0 0.0
    %280 = vmatprep.subr.mxu0 0.0
    %281 = vmatpush2.xpose.msra.mxu0 0.0
    %282 = vmatprep.subr.mxu0 0.0
    %283 = vmatpush2.xpose.msra.mxu0 0.0
    %284 = vmatprep.subr.mxu0 0.0
    %285 = vmatpush2.xpose.msra.mxu0 0.0
    %286 = vmatprep.mubr.f32.mxu0 0.0
    %287 = vmatmul.mubr.f32.gmra.mxu0 %v217
    %v288 = vpop.f32.mrf.mxu0
    %v289 = vadd.f32 0.0, %v288
    %v290 = vpop.f32.mrf.mxu0
    %291 = vdwg.mxu0
    %v292 = vsel %vm134, 1, 0
    %vm293 = vcmp.eq.s32.totalorder %v292, 1
    %v294 = vsel %vm293, %v211, -1e+30
    %v295 = vsel %vm293, %v289, -1e+30
    %v296 = vsel %vm138, %v294, -inf
    %297 = vmax.xlane.f32.xlu0 %v296
    %v298 = vpop.xlane.xlu0 %297
    %v299 = vsel %vm138, %v295, -inf
    %300 = vmax.xlane.f32.xlu0 %v299
    %v301 = vpop.xlane.xlu0 %300
    %v302 = vsub.f32 %v294, %v298
    %v303 = vsub.f32 %v295, %v301
    %v304 = vmul.f32 %v302, 1.442695
    %v305 = vpow.pop %v304
    %v306 = vmul.f32 %v303, 1.442695
    %v307 = vpow.pop %v306
    %v308 = vsel %vm138, %v305, 0.0
    %309 = vadd.xlane.f32.xlu0 %v308
    %v310 = vpop.xlane.xlu0 %309
    %v311 = vsel %vm138, %v307, 0.0
    %312 = vadd.xlane.f32.xlu0 %v311
    %v313 = vpop.xlane.xlu0 %312
    %v314 = vrcp.pop %v310
    %v315 = vrcp.pop %v313
    %v316 = vmul.f32 %v305, %v314
    %v317 = vmul.f32 %v307, %v315
    %318 = vrot.lane.b32.xlu0 %v120, 64
    %v319 = vpop.permute.xlu0 %318
    %v322 = vsel %vm138, %v316, 0
    %324 = vmatprep.subr.mxu0 0.0
    %325 = vmatpush1.msra.mxu0 0.0
    %326 = vmatprep.subr.mxu0 0.0
    %327 = vmatpush1.msra.mxu0 0.0
    %328 = vmatprep.subr.mxu0 0.0
    %329 = vmatpush1.msra.mxu0 0.0
    %330 = vmatprep.subr.mxu0 0.0
    %331 = vmatpush1.msra.mxu0 0.0
    %332 = vmatprep.subr.mxu0 0.0
    %333 = vmatpush1.msra.mxu0 0.0
    %334 = vmatprep.subr.mxu0 0.0
    %335 = vmatpush1.msra.mxu0 0.0
    %336 = vmatprep.subr.mxu0 0.0
    %337 = vmatpush1.msra.mxu0 0.0
    %338 = vmatprep.subr.mxu0 0.0
    %339 = vmatpush1.msra.mxu0 0.0
    %340 = vmatprep.subr.mxu0 0.0
    %341 = vmatpush1.msra.mxu0 0.0
    %342 = vmatprep.subr.mxu0 0.0
    %343 = vmatpush1.msra.mxu0 0.0
    %344 = vmatprep.subr.mxu0 0.0
    %345 = vmatpush1.msra.mxu0 0.0
    %346 = vmatprep.subr.mxu0 0.0
    %347 = vmatpush1.msra.mxu0 0.0
    %348 = vmatprep.subr.mxu0 0.0
    %349 = vmatpush1.msra.mxu0 0.0
    %350 = vmatprep.subr.mxu0 0.0
    %351 = vmatpush1.msra.mxu0 0.0
    %352 = vmatprep.subr.mxu0 0.0
    %353 = vmatpush1.msra.mxu0 0.0
    %354 = vmatprep.subr.mxu0 0.0
    %355 = vmatpush1.msra.mxu0 %v319
    %356 = vmatprep.subr.mxu0 0.0
    %357 = vmatpush2.msra.mxu0 0.0
    %358 = vmatprep.subr.mxu0 0.0
    %359 = vmatpush2.msra.mxu0 0.0
    %360 = vmatprep.subr.mxu0 0.0
    %361 = vmatpush2.msra.mxu0 0.0
    %362 = vmatprep.subr.mxu0 0.0
    %363 = vmatpush2.msra.mxu0 0.0
    %364 = vmatprep.subr.mxu0 0.0
    %365 = vmatpush2.msra.mxu0 0.0
    %366 = vmatprep.subr.mxu0 0.0
    %367 = vmatpush2.msra.mxu0 0.0
    %368 = vmatprep.subr.mxu0 0.0
    %369 = vmatpush2.msra.mxu0 0.0
    %370 = vmatprep.subr.mxu0 0.0
    %371 = vmatpush2.msra.mxu0 0.0
    %372 = vmatprep.subr.mxu0 0.0
    %373 = vmatpush2.msra.mxu0 0.0
    %374 = vmatprep.subr.mxu0 0.0
    %375 = vmatpush2.msra.mxu0 0.0
    %376 = vmatprep.subr.mxu0 0.0
    %377 = vmatpush2.msra.mxu0 0.0
    %378 = vmatprep.subr.mxu0 0.0
    %379 = vmatpush2.msra.mxu0 0.0
    %380 = vmatprep.subr.mxu0 0.0
    %381 = vmatpush2.msra.mxu0 0.0
    %382 = vmatprep.subr.mxu0 0.0
    %383 = vmatpush2.msra.mxu0 0.0
    %384 = vmatprep.subr.mxu0 0.0
    %385 = vmatpush2.msra.mxu0 0.0
    %386 = vmatprep.subr.mxu0 0.0
    %387 = vmatpush2.msra.mxu0 0.0
    %388 = vmatprep.mubr.f32.mxu0 0.0
    %389 = vmatmul.mubr.f32.gmra.mxu0 %v322
    %v390 = vpop.f32.mrf.mxu0
    %v391 = vadd.f32 0.0, %v390
    %v392 = vpop.f32.mrf.mxu0
    %393 = vdwg.mxu0
    %394 = vrot.lane.b32.xlu0 %v125, 64
    %v395 = vpop.permute.xlu0 %394
    %v398 = vsel %vm138, %v317, 0
    %400 = vmatprep.subr.mxu0 0.0
    %401 = vmatpush1.msra.mxu0 0.0
    %402 = vmatprep.subr.mxu0 0.0
    %403 = vmatpush1.msra.mxu0 0.0
    %404 = vmatprep.subr.mxu0 0.0
    %405 = vmatpush1.msra.mxu0 0.0
    %406 = vmatprep.subr.mxu0 0.0
    %407 = vmatpush1.msra.mxu0 0.0
    %408 = vmatprep.subr.mxu0 0.0
    %409 = vmatpush1.msra.mxu0 0.0
    %410 = vmatprep.subr.mxu0 0.0
    %411 = vmatpush1.msra.mxu0 0.0
    %412 = vmatprep.subr.mxu0 0.0
    %413 = vmatpush1.msra.mxu0 0.0
    %414 = vmatprep.subr.mxu0 0.0
    %415 = vmatpush1.msra.mxu0 0.0
    %416 = vmatprep.subr.mxu0 0.0
    %417 = vmatpush1.msra.mxu0 0.0
    %418 = vmatprep.subr.mxu0 0.0
    %419 = vmatpush1.msra.mxu0 0.0
    %420 = vmatprep.subr.mxu0 0.0
    %421 = vmatpush1.msra.mxu0 0.0
    %422 = vmatprep.subr.mxu0 0.0
    %423 = vmatpush1.msra.mxu0 0.0
    %424 = vmatprep.subr.mxu0 0.0
    %425 = vmatpush1.msra.mxu0 0.0
    %426 = vmatprep.subr.mxu0 0.0
    %427 = vmatpush1.msra.mxu0 0.0
    %428 = vmatprep.subr.mxu0 0.0
    %429 = vmatpush1.msra.mxu0 0.0
    %430 = vmatprep.subr.mxu0 0.0
    %431 = vmatpush1.msra.mxu0 %v395
    %432 = vmatprep.subr.mxu0 0.0
    %433 = vmatpush2.msra.mxu0 0.0
    %434 = vmatprep.subr.mxu0 0.0
    %435 = vmatpush2.msra.mxu0 0.0
    %436 = vmatprep.subr.mxu0 0.0
    %437 = vmatpush2.msra.mxu0 0.0
    %438 = vmatprep.subr.mxu0 0.0
    %439 = vmatpush2.msra.mxu0 0.0
    %440 = vmatprep.subr.mxu0 0.0
    %441 = vmatpush2.msra.mxu0 0.0
    %442 = vmatprep.subr.mxu0 0.0
    %443 = vmatpush2.msra.mxu0 0.0
    %444 = vmatprep.subr.mxu0 0.0
    %445 = vmatpush2.msra.mxu0 0.0
    %446 = vmatprep.subr.mxu0 0.0
    %447 = vmatpush2.msra.mxu0 0.0
    %448 = vmatprep.subr.mxu0 0.0
    %449 = vmatpush2.msra.mxu0 0.0
    %450 = vmatprep.subr.mxu0 0.0
    %451 = vmatpush2.msra.mxu0 0.0
    %452 = vmatprep.subr.mxu0 0.0
    %453 = vmatpush2.msra.mxu0 0.0
    %454 = vmatprep.subr.mxu0 0.0
    %455 = vmatpush2.msra.mxu0 0.0
    %456 = vmatprep.subr.mxu0 0.0
    %457 = vmatpush2.msra.mxu0 0.0
    %458 = vmatprep.subr.mxu0 0.0
    %459 = vmatpush2.msra.mxu0 0.0
    %460 = vmatprep.subr.mxu0 0.0
    %461 = vmatpush2.msra.mxu0 0.0
    %462 = vmatprep.subr.mxu0 0.0
    %463 = vmatpush2.msra.mxu0 0.0
    %464 = vmatprep.mubr.f32.mxu0 0.0
    %465 = vmatmul.mubr.f32.gmra.mxu0 %v398
    %v466 = vpop.f32.mrf.mxu0
    %v467 = vadd.f32 0.0, %v466
    %v468 = vpop.f32.mrf.mxu0
    %469 = vdwg.mxu0
    %470 = vrot.lane.b32.xlu0 %v128, 88
    %v471 = vpop.permute.xlu0 %470
    %472 = vrot.lane.b32.xlu0 %v120, 120
    %v473 = vpop.permute.xlu0 %472
    %v474 = vsel %vm138, %v471, 0
    %v476 = vsel %vm138, %v473, 0
    %478 = vmatprep.subr.mxu0 0.0
    %479 = vmatpush1.xpose.msra.mxu0 0.0
    %480 = vmatprep.subr.mxu0 0.0
    %481 = vmatpush1.xpose.msra.mxu0 0.0
    %482 = vmatprep.subr.mxu0 0.0
    %483 = vmatpush1.xpose.msra.mxu0 0.0
    %484 = vmatprep.subr.mxu0 0.0
    %485 = vmatpush1.xpose.msra.mxu0 0.0
    %486 = vmatprep.subr.mxu0 0.0
    %487 = vmatpush1.xpose.msra.mxu0 0.0
    %488 = vmatprep.subr.mxu0 0.0
    %489 = vmatpush1.xpose.msra.mxu0 0.0
    %490 = vmatprep.subr.mxu0 0.0
    %491 = vmatpush1.xpose.msra.mxu0 0.0
    %492 = vmatprep.subr.mxu0 0.0
    %493 = vmatpush1.xpose.msra.mxu0 0.0
    %494 = vmatprep.subr.mxu0 0.0
    %495 = vmatpush1.xpose.msra.mxu0 0.0
    %496 = vmatprep.subr.mxu0 0.0
    %497 = vmatpush1.xpose.msra.mxu0 0.0
    %498 = vmatprep.subr.mxu0 0.0
    %499 = vmatpush1.xpose.msra.mxu0 0.0
    %500 = vmatprep.subr.mxu0 0.0
    %501 = vmatpush1.xpose.msra.mxu0 0.0
    %502 = vmatprep.subr.mxu0 0.0
    %503 = vmatpush1.xpose.msra.mxu0 0.0
    %504 = vmatprep.subr.mxu0 0.0
    %505 = vmatpush1.xpose.msra.mxu0 0.0
    %506 = vmatprep.subr.mxu0 0.0
    %507 = vmatpush1.xpose.msra.mxu0 0.0
    %508 = vmatprep.subr.mxu0 0.0
    %509 = vmatpush1.xpose.msra.mxu0 %v476
    %510 = vmatprep.subr.mxu0 0.0
    %511 = vmatpush2.xpose.msra.mxu0 0.0
    %512 = vmatprep.subr.mxu0 0.0
    %513 = vmatpush2.xpose.msra.mxu0 0.0
    %514 = vmatprep.subr.mxu0 0.0
    %515 = vmatpush2.xpose.msra.mxu0 0.0
    %516 = vmatprep.subr.mxu0 0.0
    %517 = vmatpush2.xpose.msra.mxu0 0.0
    %518 = vmatprep.subr.mxu0 0.0
    %519 = vmatpush2.xpose.msra.mxu0 0.0
    %520 = vmatprep.subr.mxu0 0.0
    %521 = vmatpush2.xpose.msra.mxu0 0.0
    %522 = vmatprep.subr.mxu0 0.0
    %523 = vmatpush2.xpose.msra.mxu0 0.0
    %524 = vmatprep.subr.mxu0 0.0
    %525 = vmatpush2.xpose.msra.mxu0 0.0
    %526 = vmatprep.subr.mxu0 0.0
    %527 = vmatpush2.xpose.msra.mxu0 0.0
    %528 = vmatprep.subr.mxu0 0.0
    %529 = vmatpush2.xpose.msra.mxu0 0.0
    %530 = vmatprep.subr.mxu0 0.0
    %531 = vmatpush2.xpose.msra.mxu0 0.0
    %532 = vmatprep.subr.mxu0 0.0
    %533 = vmatpush2.xpose.msra.mxu0 0.0
    %534 = vmatprep.subr.mxu0 0.0
    %535 = vmatpush2.xpose.msra.mxu0 0.0
    %536 = vmatprep.subr.mxu0 0.0
    %537 = vmatpush2.xpose.msra.mxu0 0.0
    %538 = vmatprep.subr.mxu0 0.0
    %539 = vmatpush2.xpose.msra.mxu0 0.0
    %540 = vmatprep.subr.mxu0 0.0
    %541 = vmatpush2.xpose.msra.mxu0 0.0
    %542 = vmatprep.mubr.f32.mxu0 0.0
    %543 = vmatmul.mubr.f32.gmra.mxu0 %v474
    %v544 = vpop.f32.mrf.mxu0
    %v545 = vadd.f32 0.0, %v544
    %v546 = vpop.f32.mrf.mxu0
    %547 = vdwg.mxu0
    %548 = vrot.lane.b32.xlu0 %v129, 88
    %v549 = vpop.permute.xlu0 %548
    %550 = vrot.lane.b32.xlu0 %v125, 120
    %v551 = vpop.permute.xlu0 %550
    %v552 = vsel %vm138, %v549, 0
    %v554 = vsel %vm138, %v551, 0
    %556 = vmatprep.subr.mxu0 0.0
    %557 = vmatpush1.xpose.msra.mxu0 0.0
    %558 = vmatprep.subr.mxu0 0.0
    %559 = vmatpush1.xpose.msra.mxu0 0.0
    %560 = vmatprep.subr.mxu0 0.0
    %561 = vmatpush1.xpose.msra.mxu0 0.0
    %562 = vmatprep.subr.mxu0 0.0
    %563 = vmatpush1.xpose.msra.mxu0 0.0
    %564 = vmatprep.subr.mxu0 0.0
    %565 = vmatpush1.xpose.msra.mxu0 0.0
    %566 = vmatprep.subr.mxu0 0.0
    %567 = vmatpush1.xpose.msra.mxu0 0.0
    %568 = vmatprep.subr.mxu0 0.0
    %569 = vmatpush1.xpose.msra.mxu0 0.0
    %570 = vmatprep.subr.mxu0 0.0
    %571 = vmatpush1.xpose.msra.mxu0 0.0
    %572 = vmatprep.subr.mxu0 0.0
    %573 = vmatpush1.xpose.msra.mxu0 0.0
    %574 = vmatprep.subr.mxu0 0.0
    %575 = vmatpush1.xpose.msra.mxu0 0.0
    %576 = vmatprep.subr.mxu0 0.0
    %577 = vmatpush1.xpose.msra.mxu0 0.0
    %578 = vmatprep.subr.mxu0 0.0
    %579 = vmatpush1.xpose.msra.mxu0 0.0
    %580 = vmatprep.subr.mxu0 0.0
    %581 = vmatpush1.xpose.msra.mxu0 0.0
    %582 = vmatprep.subr.mxu0 0.0
    %583 = vmatpush1.xpose.msra.mxu0 0.0
    %584 = vmatprep.subr.mxu0 0.0
    %585 = vmatpush1.xpose.msra.mxu0 0.0
    %586 = vmatprep.subr.mxu0 0.0
    %587 = vmatpush1.xpose.msra.mxu0 %v554
    %588 = vmatprep.subr.mxu0 0.0
    %589 = vmatpush2.xpose.msra.mxu0 0.0
    %590 = vmatprep.subr.mxu0 0.0
    %591 = vmatpush2.xpose.msra.mxu0 0.0
    %592 = vmatprep.subr.mxu0 0.0
    %593 = vmatpush2.xpose.msra.mxu0 0.0
    %594 = vmatprep.subr.mxu0 0.0
    %595 = vmatpush2.xpose.msra.mxu0 0.0
    %596 = vmatprep.subr.mxu0 0.0
    %597 = vmatpush2.xpose.msra.mxu0 0.0
    %598 = vmatprep.subr.mxu0 0.0
    %599 = vmatpush2.xpose.msra.mxu0 0.0
    %600 = vmatprep.subr.mxu0 0.0
    %601 = vmatpush2.xpose.msra.mxu0 0.0
    %602 = vmatprep.subr.mxu0 0.0
    %603 = vmatpush2.xpose.msra.mxu0 0.0
    %604 = vmatprep.subr.mxu0 0.0
    %605 = vmatpush2.xpose.msra.mxu0 0.0
    %606 = vmatprep.subr.mxu0 0.0
    %607 = vmatpush2.xpose.msra.mxu0 0.0
    %608 = vmatprep.subr.mxu0 0.0
    %609 = vmatpush2.xpose.msra.mxu0 0.0
    %610 = vmatprep.subr.mxu0 0.0
    %611 = vmatpush2.xpose.msra.mxu0 0.0
    %612 = vmatprep.subr.mxu0 0.0
    %613 = vmatpush2.xpose.msra.mxu0 0.0
    %614 = vmatprep.subr.mxu0 0.0
    %615 = vmatpush2.xpose.msra.mxu0 0.0
    %616 = vmatprep.subr.mxu0 0.0
    %617 = vmatpush2.xpose.msra.mxu0 0.0
    %618 = vmatprep.subr.mxu0 0.0
    %619 = vmatpush2.xpose.msra.mxu0 0.0
    %620 = vmatprep.mubr.f32.mxu0 0.0
    %621 = vmatmul.mubr.f32.gmra.mxu0 %v552
    %v622 = vpop.f32.mrf.mxu0
    %v623 = vadd.f32 0.0, %v622
    %v624 = vpop.f32.mrf.mxu0
    %625 = vdwg.mxu0
    %v626 = vsel %vm293, %v545, -1e+30
    %v627 = vsel %vm293, %v623, -1e+30
    %v628 = vsel %vm138, %v626, -inf
    %629 = vmax.xlane.f32.xlu0 %v628
    %v630 = vpop.xlane.xlu0 %629
    %v631 = vsel %vm138, %v627, -inf
    %632 = vmax.xlane.f32.xlu0 %v631
    %v633 = vpop.xlane.xlu0 %632
    %v634 = vsub.f32 %v626, %v630
    %v635 = vsub.f32 %v627, %v633
    %v636 = vmul.f32 %v634, 1.442695
    %v637 = vpow.pop %v636
    %v638 = vmul.f32 %v635, 1.442695
    %v639 = vpow.pop %v638
    %v640 = vsel %vm138, %v637, 0.0
    %641 = vadd.xlane.f32.xlu0 %v640
    %v642 = vpop.xlane.xlu0 %641
    %v643 = vsel %vm138, %v639, 0.0
    %644 = vadd.xlane.f32.xlu0 %v643
    %v645 = vpop.xlane.xlu0 %644
    %v646 = vrcp.pop %v642
    %v647 = vrcp.pop %v645
    %v648 = vmul.f32 %v637, %v646
    %v649 = vmul.f32 %v639, %v647
    %650 = vrot.lane.b32.xlu0 %v120, 56
    %v651 = vpop.permute.xlu0 %650
    %v654 = vsel %vm138, %v648, 0
    %656 = vmatprep.subr.mxu0 0.0
    %657 = vmatpush1.msra.mxu0 0.0
    %658 = vmatprep.subr.mxu0 0.0
    %659 = vmatpush1.msra.mxu0 0.0
    %660 = vmatprep.subr.mxu0 0.0
    %661 = vmatpush1.msra.mxu0 0.0
    %662 = vmatprep.subr.mxu0 0.0
    %663 = vmatpush1.msra.mxu0 0.0
    %664 = vmatprep.subr.mxu0 0.0
    %665 = vmatpush1.msra.mxu0 0.0
    %666 = vmatprep.subr.mxu0 0.0
    %667 = vmatpush1.msra.mxu0 0.0
    %668 = vmatprep.subr.mxu0 0.0
    %669 = vmatpush1.msra.mxu0 0.0
    %670 = vmatprep.subr.mxu0 0.0
    %671 = vmatpush1.msra.mxu0 0.0
    %672 = vmatprep.subr.mxu0 0.0
    %673 = vmatpush1.msra.mxu0 0.0
    %674 = vmatprep.subr.mxu0 0.0
    %675 = vmatpush1.msra.mxu0 0.0
    %676 = vmatprep.subr.mxu0 0.0
    %677 = vmatpush1.msra.mxu0 0.0
    %678 = vmatprep.subr.mxu0 0.0
    %679 = vmatpush1.msra.mxu0 0.0
    %680 = vmatprep.subr.mxu0 0.0
    %681 = vmatpush1.msra.mxu0 0.0
    %682 = vmatprep.subr.mxu0 0.0
    %683 = vmatpush1.msra.mxu0 0.0
    %684 = vmatprep.subr.mxu0 0.0
    %685 = vmatpush1.msra.mxu0 0.0
    %686 = vmatprep.subr.mxu0 0.0
    %687 = vmatpush1.msra.mxu0 %v651
    %688 = vmatprep.subr.mxu0 0.0
    %689 = vmatpush2.msra.mxu0 0.0
    %690 = vmatprep.subr.mxu0 0.0
    %691 = vmatpush2.msra.mxu0 0.0
    %692 = vmatprep.subr.mxu0 0.0
    %693 = vmatpush2.msra.mxu0 0.0
    %694 = vmatprep.subr.mxu0 0.0
    %695 = vmatpush2.msra.mxu0 0.0
    %696 = vmatprep.subr.mxu0 0.0
    %697 = vmatpush2.msra.mxu0 0.0
    %698 = vmatprep.subr.mxu0 0.0
    %699 = vmatpush2.msra.mxu0 0.0
    %700 = vmatprep.subr.mxu0 0.0
    %701 = vmatpush2.msra.mxu0 0.0
    %702 = vmatprep.subr.mxu0 0.0
    %703 = vmatpush2.msra.mxu0 0.0
    %704 = vmatprep.subr.mxu0 0.0
    %705 = vmatpush2.msra.mxu0 0.0
    %706 = vmatprep.subr.mxu0 0.0
    %707 = vmatpush2.msra.mxu0 0.0
    %708 = vmatprep.subr.mxu0 0.0
    %709 = vmatpush2.msra.mxu0 0.0
    %710 = vmatprep.subr.mxu0 0.0
    %711 = vmatpush2.msra.mxu0 0.0
    %712 = vmatprep.subr.mxu0 0.0
    %713 = vmatpush2.msra.mxu0 0.0
    %714 = vmatprep.subr.mxu0 0.0
    %715 = vmatpush2.msra.mxu0 0.0
    %716 = vmatprep.subr.mxu0 0.0
    %717 = vmatpush2.msra.mxu0 0.0
    %718 = vmatprep.subr.mxu0 0.0
    %719 = vmatpush2.msra.mxu0 0.0
    %720 = vmatprep.mubr.f32.mxu0 0.0
    %721 = vmatmul.mubr.f32.gmra.mxu0 %v654
    %v722 = vpop.f32.mrf.mxu0
    %v723 = vadd.f32 0.0, %v722
    %v724 = vpop.f32.mrf.mxu0
    %725 = vdwg.mxu0
    %726 = vrot.lane.b32.xlu0 %v125, 56
    %v727 = vpop.permute.xlu0 %726
    %v730 = vsel %vm138, %v649, 0
    %732 = vmatprep.subr.mxu0 0.0
    %733 = vmatpush1.msra.mxu0 0.0
    %734 = vmatprep.subr.mxu0 0.0
    %735 = vmatpush1.msra.mxu0 0.0
    %736 = vmatprep.subr.mxu0 0.0
    %737 = vmatpush1.msra.mxu0 0.0
    %738 = vmatprep.subr.mxu0 0.0
    %739 = vmatpush1.msra.mxu0 0.0
    %740 = vmatprep.subr.mxu0 0.0
    %741 = vmatpush1.msra.mxu0 0.0
    %742 = vmatprep.subr.mxu0 0.0
    %743 = vmatpush1.msra.mxu0 0.0
    %744 = vmatprep.subr.mxu0 0.0
    %745 = vmatpush1.msra.mxu0 0.0
    %746 = vmatprep.subr.mxu0 0.0
    %747 = vmatpush1.msra.mxu0 0.0
    %748 = vmatprep.subr.mxu0 0.0
    %749 = vmatpush1.msra.mxu0 0.0
    %750 = vmatprep.subr.mxu0 0.0
    %751 = vmatpush1.msra.mxu0 0.0
    %752 = vmatprep.subr.mxu0 0.0
    %753 = vmatpush1.msra.mxu0 0.0
    %754 = vmatprep.subr.mxu0 0.0
    %755 = vmatpush1.msra.mxu0 0.0
    %756 = vmatprep.subr.mxu0 0.0
    %757 = vmatpush1.msra.mxu0 0.0
    %758 = vmatprep.subr.mxu0 0.0
    %759 = vmatpush1.msra.mxu0 0.0
    %760 = vmatprep.subr.mxu0 0.0
    %761 = vmatpush1.msra.mxu0 0.0
    %762 = vmatprep.subr.mxu0 0.0
    %763 = vmatpush1.msra.mxu0 %v727
    %764 = vmatprep.subr.mxu0 0.0
    %765 = vmatpush2.msra.mxu0 0.0
    %766 = vmatprep.subr.mxu0 0.0
    %767 = vmatpush2.msra.mxu0 0.0
    %768 = vmatprep.subr.mxu0 0.0
    %769 = vmatpush2.msra.mxu0 0.0
    %770 = vmatprep.subr.mxu0 0.0
    %771 = vmatpush2.msra.mxu0 0.0
    %772 = vmatprep.subr.mxu0 0.0
    %773 = vmatpush2.msra.mxu0 0.0
    %774 = vmatprep.subr.mxu0 0.0
    %775 = vmatpush2.msra.mxu0 0.0
    %776 = vmatprep.subr.mxu0 0.0
    %777 = vmatpush2.msra.mxu0 0.0
    %778 = vmatprep.subr.mxu0 0.0
    %779 = vmatpush2.msra.mxu0 0.0
    %780 = vmatprep.subr.mxu0 0.0
    %781 = vmatpush2.msra.mxu0 0.0
    %782 = vmatprep.subr.mxu0 0.0
    %783 = vmatpush2.msra.mxu0 0.0
    %784 = vmatprep.subr.mxu0 0.0
    %785 = vmatpush2.msra.mxu0 0.0
    %786 = vmatprep.subr.mxu0 0.0
    %787 = vmatpush2.msra.mxu0 0.0
    %788 = vmatprep.subr.mxu0 0.0
    %789 = vmatpush2.msra.mxu0 0.0
    %790 = vmatprep.subr.mxu0 0.0
    %791 = vmatpush2.msra.mxu0 0.0
    %792 = vmatprep.subr.mxu0 0.0
    %793 = vmatpush2.msra.mxu0 0.0
    %794 = vmatprep.subr.mxu0 0.0
    %795 = vmatpush2.msra.mxu0 0.0
    %796 = vmatprep.mubr.f32.mxu0 0.0
    %797 = vmatmul.mubr.f32.gmra.mxu0 %v730
    %v798 = vpop.f32.mrf.mxu0
    %v799 = vadd.f32 0.0, %v798
    %v800 = vpop.f32.mrf.mxu0
    %801 = vdwg.mxu0
    %802 = vrot.lane.b32.xlu0 %v128, 80
    %v803 = vpop.permute.xlu0 %802
    %804 = vrot.lane.b32.xlu0 %v120, 112
    %v805 = vpop.permute.xlu0 %804
    %v806 = vsel %vm138, %v803, 0
    %v808 = vsel %vm138, %v805, 0
    %810 = vmatprep.subr.mxu0 0.0
    %811 = vmatpush1.xpose.msra.mxu0 0.0
    %812 = vmatprep.subr.mxu0 0.0
    %813 = vmatpush1.xpose.msra.mxu0 0.0
    %814 = vmatprep.subr.mxu0 0.0
    %815 = vmatpush1.xpose.msra.mxu0 0.0
    %816 = vmatprep.subr.mxu0 0.0
    %817 = vmatpush1.xpose.msra.mxu0 0.0
    %818 = vmatprep.subr.mxu0 0.0
    %819 = vmatpush1.xpose.msra.mxu0 0.0
    %820 = vmatprep.subr.mxu0 0.0
    %821 = vmatpush1.xpose.msra.mxu0 0.0
    %822 = vmatprep.subr.mxu0 0.0
    %823 = vmatpush1.xpose.msra.mxu0 0.0
    %824 = vmatprep.subr.mxu0 0.0
    %825 = vmatpush1.xpose.msra.mxu0 0.0
    %826 = vmatprep.subr.mxu0 0.0
    %827 = vmatpush1.xpose.msra.mxu0 0.0
    %828 = vmatprep.subr.mxu0 0.0
    %829 = vmatpush1.xpose.msra.mxu0 0.0
    %830 = vmatprep.subr.mxu0 0.0
    %831 = vmatpush1.xpose.msra.mxu0 0.0
    %832 = vmatprep.subr.mxu0 0.0
    %833 = vmatpush1.xpose.msra.mxu0 0.0
    %834 = vmatprep.subr.mxu0 0.0
    %835 = vmatpush1.xpose.msra.mxu0 0.0
    %836 = vmatprep.subr.mxu0 0.0
    %837 = vmatpush1.xpose.msra.mxu0 0.0
    %838 = vmatprep.subr.mxu0 0.0
    %839 = vmatpush1.xpose.msra.mxu0 0.0
    %840 = vmatprep.subr.mxu0 0.0
    %841 = vmatpush1.xpose.msra.mxu0 %v808
    %842 = vmatprep.subr.mxu0 0.0
    %843 = vmatpush2.xpose.msra.mxu0 0.0
    %844 = vmatprep.subr.mxu0 0.0
    %845 = vmatpush2.xpose.msra.mxu0 0.0
    %846 = vmatprep.subr.mxu0 0.0
    %847 = vmatpush2.xpose.msra.mxu0 0.0
    %848 = vmatprep.subr.mxu0 0.0
    %849 = vmatpush2.xpose.msra.mxu0 0.0
    %850 = vmatprep.subr.mxu0 0.0
    %851 = vmatpush2.xpose.msra.mxu0 0.0
    %852 = vmatprep.subr.mxu0 0.0
    %853 = vmatpush2.xpose.msra.mxu0 0.0
    %854 = vmatprep.subr.mxu0 0.0
    %855 = vmatpush2.xpose.msra.mxu0 0.0
    %856 = vmatprep.subr.mxu0 0.0
    %857 = vmatpush2.xpose.msra.mxu0 0.0
    %858 = vmatprep.subr.mxu0 0.0
    %859 = vmatpush2.xpose.msra.mxu0 0.0
    %860 = vmatprep.subr.mxu0 0.0
    %861 = vmatpush2.xpose.msra.mxu0 0.0
    %862 = vmatprep.subr.mxu0 0.0
    %863 = vmatpush2.xpose.msra.mxu0 0.0
    %864 = vmatprep.subr.mxu0 0.0
    %865 = vmatpush2.xpose.msra.mxu0 0.0
    %866 = vmatprep.subr.mxu0 0.0
    %867 = vmatpush2.xpose.msra.mxu0 0.0
    %868 = vmatprep.subr.mxu0 0.0
    %869 = vmatpush2.xpose.msra.mxu0 0.0
    %870 = vmatprep.subr.mxu0 0.0
    %871 = vmatpush2.xpose.msra.mxu0 0.0
    %872 = vmatprep.subr.mxu0 0.0
    %873 = vmatpush2.xpose.msra.mxu0 0.0
    %874 = vmatprep.mubr.f32.mxu0 0.0
    %875 = vmatmul.mubr.f32.gmra.mxu0 %v806
    %v876 = vpop.f32.mrf.mxu0
    %v877 = vadd.f32 0.0, %v876
    %v878 = vpop.f32.mrf.mxu0
    %879 = vdwg.mxu0
    %880 = vrot.lane.b32.xlu0 %v129, 80
    %v881 = vpop.permute.xlu0 %880
    %882 = vrot.lane.b32.xlu0 %v125, 112
    %v883 = vpop.permute.xlu0 %882
    %v884 = vsel %vm138, %v881, 0
    %v886 = vsel %vm138, %v883, 0
    %888 = vmatprep.subr.mxu0 0.0
    %889 = vmatpush1.xpose.msra.mxu0 0.0
    %890 = vmatprep.subr.mxu0 0.0
    %891 = vmatpush1.xpose.msra.mxu0 0.0
    %892 = vmatprep.subr.mxu0 0.0
    %893 = vmatpush1.xpose.msra.mxu0 0.0
    %894 = vmatprep.subr.mxu0 0.0
    %895 = vmatpush1.xpose.msra.mxu0 0.0
    %896 = vmatprep.subr.mxu0 0.0
    %897 = vmatpush1.xpose.msra.mxu0 0.0
    %898 = vmatprep.subr.mxu0 0.0
    %899 = vmatpush1.xpose.msra.mxu0 0.0
    %900 = vmatprep.subr.mxu0 0.0
    %901 = vmatpush1.xpose.msra.mxu0 0.0
    %902 = vmatprep.subr.mxu0 0.0
    %903 = vmatpush1.xpose.msra.mxu0 0.0
    %904 = vmatprep.subr.mxu0 0.0
    %905 = vmatpush1.xpose.msra.mxu0 0.0
    %906 = vmatprep.subr.mxu0 0.0
    %907 = vmatpush1.xpose.msra.mxu0 0.0
    %908 = vmatprep.subr.mxu0 0.0
    %909 = vmatpush1.xpose.msra.mxu0 0.0
    %910 = vmatprep.subr.mxu0 0.0
    %911 = vmatpush1.xpose.msra.mxu0 0.0
    %912 = vmatprep.subr.mxu0 0.0
    %913 = vmatpush1.xpose.msra.mxu0 0.0
    %914 = vmatprep.subr.mxu0 0.0
    %915 = vmatpush1.xpose.msra.mxu0 0.0
    %916 = vmatprep.subr.mxu0 0.0
    %917 = vmatpush1.xpose.msra.mxu0 0.0
    %918 = vmatprep.subr.mxu0 0.0
    %919 = vmatpush1.xpose.msra.mxu0 %v886
    %920 = vmatprep.subr.mxu0 0.0
    %921 = vmatpush2.xpose.msra.mxu0 0.0
    %922 = vmatprep.subr.mxu0 0.0
    %923 = vmatpush2.xpose.msra.mxu0 0.0
    %924 = vmatprep.subr.mxu0 0.0
    %925 = vmatpush2.xpose.msra.mxu0 0.0
    %926 = vmatprep.subr.mxu0 0.0
    %927 = vmatpush2.xpose.msra.mxu0 0.0
    %928 = vmatprep.subr.mxu0 0.0
    %929 = vmatpush2.xpose.msra.mxu0 0.0
    %930 = vmatprep.subr.mxu0 0.0
    %931 = vmatpush2.xpose.msra.mxu0 0.0
    %932 = vmatprep.subr.mxu0 0.0
    %933 = vmatpush2.xpose.msra.mxu0 0.0
    %934 = vmatprep.subr.mxu0 0.0
    %935 = vmatpush2.xpose.msra.mxu0 0.0
    %936 = vmatprep.subr.mxu0 0.0
    %937 = vmatpush2.xpose.msra.mxu0 0.0
    %938 = vmatprep.subr.mxu0 0.0
    %939 = vmatpush2.xpose.msra.mxu0 0.0
    %940 = vmatprep.subr.mxu0 0.0
    %941 = vmatpush2.xpose.msra.mxu0 0.0
    %942 = vmatprep.subr.mxu0 0.0
    %943 = vmatpush2.xpose.msra.mxu0 0.0
    %944 = vmatprep.subr.mxu0 0.0
    %945 = vmatpush2.xpose.msra.mxu0 0.0
    %946 = vmatprep.subr.mxu0 0.0
    %947 = vmatpush2.xpose.msra.mxu0 0.0
    %948 = vmatprep.subr.mxu0 0.0
    %949 = vmatpush2.xpose.msra.mxu0 0.0
    %950 = vmatprep.subr.mxu0 0.0
    %951 = vmatpush2.xpose.msra.mxu0 0.0
    %952 = vmatprep.mubr.f32.mxu0 0.0
    %953 = vmatmul.mubr.f32.gmra.mxu0 %v884
    %v954 = vpop.f32.mrf.mxu0
    %v955 = vadd.f32 0.0, %v954
    %v956 = vpop.f32.mrf.mxu0
    %957 = vdwg.mxu0
    %v958 = vsel %vm293, %v877, -1e+30
    %v959 = vsel %vm293, %v955, -1e+30
    %v960 = vsel %vm138, %v958, -inf
    %961 = vmax.xlane.f32.xlu0 %v960
    %v962 = vpop.xlane.xlu0 %961
    %v963 = vsel %vm138, %v959, -inf
    %964 = vmax.xlane.f32.xlu0 %v963
    %v965 = vpop.xlane.xlu0 %964
    %v966 = vsub.f32 %v958, %v962
    %v967 = vsub.f32 %v959, %v965
    %v968 = vmul.f32 %v966, 1.442695
    %v969 = vpow.pop %v968
    %v970 = vmul.f32 %v967, 1.442695
    %v971 = vpow.pop %v970
    %v972 = vsel %vm138, %v969, 0.0
    %973 = vadd.xlane.f32.xlu0 %v972
    %v974 = vpop.xlane.xlu0 %973
    %v975 = vsel %vm138, %v971, 0.0
    %976 = vadd.xlane.f32.xlu0 %v975
    %v977 = vpop.xlane.xlu0 %976
    %v978 = vrcp.pop %v974
    %v979 = vrcp.pop %v977
    %v980 = vmul.f32 %v969, %v978
    %v981 = vmul.f32 %v971, %v979
    %982 = vrot.lane.b32.xlu0 %v120, 48
    %v983 = vpop.permute.xlu0 %982
    %v986 = vsel %vm138, %v980, 0
    %988 = vmatprep.subr.mxu0 0.0
    %989 = vmatpush1.msra.mxu0 0.0
    %990 = vmatprep.subr.mxu0 0.0
    %991 = vmatpush1.msra.mxu0 0.0
    %992 = vmatprep.subr.mxu0 0.0
    %993 = vmatpush1.msra.mxu0 0.0
    %994 = vmatprep.subr.mxu0 0.0
    %995 = vmatpush1.msra.mxu0 0.0
    %996 = vmatprep.subr.mxu0 0.0
    %997 = vmatpush1.msra.mxu0 0.0
    %998 = vmatprep.subr.mxu0 0.0
    %999 = vmatpush1.msra.mxu0 0.0
    %1000 = vmatprep.subr.mxu0 0.0
    %1001 = vmatpush1.msra.mxu0 0.0
    %1002 = vmatprep.subr.mxu0 0.0
    %1003 = vmatpush1.msra.mxu0 0.0
    %1004 = vmatprep.subr.mxu0 0.0
    %1005 = vmatpush1.msra.mxu0 0.0
    %1006 = vmatprep.subr.mxu0 0.0
    %1007 = vmatpush1.msra.mxu0 0.0
    %1008 = vmatprep.subr.mxu0 0.0
    %1009 = vmatpush1.msra.mxu0 0.0
    %1010 = vmatprep.subr.mxu0 0.0
    %1011 = vmatpush1.msra.mxu0 0.0
    %1012 = vmatprep.subr.mxu0 0.0
    %1013 = vmatpush1.msra.mxu0 0.0
    %1014 = vmatprep.subr.mxu0 0.0
    %1015 = vmatpush1.msra.mxu0 0.0
    %1016 = vmatprep.subr.mxu0 0.0
    %1017 = vmatpush1.msra.mxu0 0.0
    %1018 = vmatprep.subr.mxu0 0.0
    %1019 = vmatpush1.msra.mxu0 %v983
    %1020 = vmatprep.subr.mxu0 0.0
    %1021 = vmatpush2.msra.mxu0 0.0
    %1022 = vmatprep.subr.mxu0 0.0
    %1023 = vmatpush2.msra.mxu0 0.0
    %1024 = vmatprep.subr.mxu0 0.0
    %1025 = vmatpush2.msra.mxu0 0.0
    %1026 = vmatprep.subr.mxu0 0.0
    %1027 = vmatpush2.msra.mxu0 0.0
    %1028 = vmatprep.subr.mxu0 0.0
    %1029 = vmatpush2.msra.mxu0 0.0
    %1030 = vmatprep.subr.mxu0 0.0
    %1031 = vmatpush2.msra.mxu0 0.0
    %1032 = vmatprep.subr.mxu0 0.0
    %1033 = vmatpush2.msra.mxu0 0.0
    %1034 = vmatprep.subr.mxu0 0.0
    %1035 = vmatpush2.msra.mxu0 0.0
    %1036 = vmatprep.subr.mxu0 0.0
    %1037 = vmatpush2.msra.mxu0 0.0
    %1038 = vmatprep.subr.mxu0 0.0
    %1039 = vmatpush2.msra.mxu0 0.0
    %1040 = vmatprep.subr.mxu0 0.0
    %1041 = vmatpush2.msra.mxu0 0.0
    %1042 = vmatprep.subr.mxu0 0.0
    %1043 = vmatpush2.msra.mxu0 0.0
    %1044 = vmatprep.subr.mxu0 0.0
    %1045 = vmatpush2.msra.mxu0 0.0
    %1046 = vmatprep.subr.mxu0 0.0
    %1047 = vmatpush2.msra.mxu0 0.0
    %1048 = vmatprep.subr.mxu0 0.0
    %1049 = vmatpush2.msra.mxu0 0.0
    %1050 = vmatprep.subr.mxu0 0.0
    %1051 = vmatpush2.msra.mxu0 0.0
    %1052 = vmatprep.mubr.f32.mxu0 0.0
    %1053 = vmatmul.mubr.f32.gmra.mxu0 %v986
    %v1054 = vpop.f32.mrf.mxu0
    %v1055 = vadd.f32 0.0, %v1054
    %v1056 = vpop.f32.mrf.mxu0
    %1057 = vdwg.mxu0
    %1058 = vrot.lane.b32.xlu0 %v125, 48
    %v1059 = vpop.permute.xlu0 %1058
    %v1062 = vsel %vm138, %v981, 0
    %1064 = vmatprep.subr.mxu0 0.0
    %1065 = vmatpush1.msra.mxu0 0.0
    %1066 = vmatprep.subr.mxu0 0.0
    %1067 = vmatpush1.msra.mxu0 0.0
    %1068 = vmatprep.subr.mxu0 0.0
    %1069 = vmatpush1.msra.mxu0 0.0
    %1070 = vmatprep.subr.mxu0 0.0
    %1071 = vmatpush1.msra.mxu0 0.0
    %1072 = vmatprep.subr.mxu0 0.0
    %1073 = vmatpush1.msra.mxu0 0.0
    %1074 = vmatprep.subr.mxu0 0.0
    %1075 = vmatpush1.msra.mxu0 0.0
    %1076 = vmatprep.subr.mxu0 0.0
    %1077 = vmatpush1.msra.mxu0 0.0
    %1078 = vmatprep.subr.mxu0 0.0
    %1079 = vmatpush1.msra.mxu0 0.0
    %1080 = vmatprep.subr.mxu0 0.0
    %1081 = vmatpush1.msra.mxu0 0.0
    %1082 = vmatprep.subr.mxu0 0.0
    %1083 = vmatpush1.msra.mxu0 0.0
    %1084 = vmatprep.subr.mxu0 0.0
    %1085 = vmatpush1.msra.mxu0 0.0
    %1086 = vmatprep.subr.mxu0 0.0
    %1087 = vmatpush1.msra.mxu0 0.0
    %1088 = vmatprep.subr.mxu0 0.0
    %1089 = vmatpush1.msra.mxu0 0.0
    %1090 = vmatprep.subr.mxu0 0.0
    %1091 = vmatpush1.msra.mxu0 0.0
    %1092 = vmatprep.subr.mxu0 0.0
    %1093 = vmatpush1.msra.mxu0 0.0
    %1094 = vmatprep.subr.mxu0 0.0
    %1095 = vmatpush1.msra.mxu0 %v1059
    %1096 = vmatprep.subr.mxu0 0.0
    %1097 = vmatpush2.msra.mxu0 0.0
    %1098 = vmatprep.subr.mxu0 0.0
    %1099 = vmatpush2.msra.mxu0 0.0
    %1100 = vmatprep.subr.mxu0 0.0
    %1101 = vmatpush2.msra.mxu0 0.0
    %1102 = vmatprep.subr.mxu0 0.0
    %1103 = vmatpush2.msra.mxu0 0.0
    %1104 = vmatprep.subr.mxu0 0.0
    %1105 = vmatpush2.msra.mxu0 0.0
    %1106 = vmatprep.subr.mxu0 0.0
    %1107 = vmatpush2.msra.mxu0 0.0
    %1108 = vmatprep.subr.mxu0 0.0
    %1109 = vmatpush2.msra.mxu0 0.0
    %1110 = vmatprep.subr.mxu0 0.0
    %1111 = vmatpush2.msra.mxu0 0.0
    %1112 = vmatprep.subr.mxu0 0.0
    %1113 = vmatpush2.msra.mxu0 0.0
    %1114 = vmatprep.subr.mxu0 0.0
    %1115 = vmatpush2.msra.mxu0 0.0
    %1116 = vmatprep.subr.mxu0 0.0
    %1117 = vmatpush2.msra.mxu0 0.0
    %1118 = vmatprep.subr.mxu0 0.0
    %1119 = vmatpush2.msra.mxu0 0.0
    %1120 = vmatprep.subr.mxu0 0.0
    %1121 = vmatpush2.msra.mxu0 0.0
    %1122 = vmatprep.subr.mxu0 0.0
    %1123 = vmatpush2.msra.mxu0 0.0
    %1124 = vmatprep.subr.mxu0 0.0
    %1125 = vmatpush2.msra.mxu0 0.0
    %1126 = vmatprep.subr.mxu0 0.0
    %1127 = vmatpush2.msra.mxu0 0.0
    %1128 = vmatprep.mubr.f32.mxu0 0.0
    %1129 = vmatmul.mubr.f32.gmra.mxu0 %v1062
    %v1130 = vpop.f32.mrf.mxu0
    %v1131 = vadd.f32 0.0, %v1130
    %v1132 = vpop.f32.mrf.mxu0
    %1133 = vdwg.mxu0
    %1134 = vrot.lane.b32.xlu0 %v128, 72
    %v1135 = vpop.permute.xlu0 %1134
    %1136 = vrot.lane.b32.xlu0 %v120, 104
    %v1137 = vpop.permute.xlu0 %1136
    %v1138 = vsel %vm138, %v1135, 0
    %v1140 = vsel %vm138, %v1137, 0
    %1142 = vmatprep.subr.mxu0 0.0
    %1143 = vmatpush1.xpose.msra.mxu0 0.0
    %1144 = vmatprep.subr.mxu0 0.0
    %1145 = vmatpush1.xpose.msra.mxu0 0.0
    %1146 = vmatprep.subr.mxu0 0.0
    %1147 = vmatpush1.xpose.msra.mxu0 0.0
    %1148 = vmatprep.subr.mxu0 0.0
    %1149 = vmatpush1.xpose.msra.mxu0 0.0
    %1150 = vmatprep.subr.mxu0 0.0
    %1151 = vmatpush1.xpose.msra.mxu0 0.0
    %1152 = vmatprep.subr.mxu0 0.0
    %1153 = vmatpush1.xpose.msra.mxu0 0.0
    %1154 = vmatprep.subr.mxu0 0.0
    %1155 = vmatpush1.xpose.msra.mxu0 0.0
    %1156 = vmatprep.subr.mxu0 0.0
    %1157 = vmatpush1.xpose.msra.mxu0 0.0
    %1158 = vmatprep.subr.mxu0 0.0
    %1159 = vmatpush1.xpose.msra.mxu0 0.0
    %1160 = vmatprep.subr.mxu0 0.0
    %1161 = vmatpush1.xpose.msra.mxu0 0.0
    %1162 = vmatprep.subr.mxu0 0.0
    %1163 = vmatpush1.xpose.msra.mxu0 0.0
    %1164 = vmatprep.subr.mxu0 0.0
    %1165 = vmatpush1.xpose.msra.mxu0 0.0
    %1166 = vmatprep.subr.mxu0 0.0
    %1167 = vmatpush1.xpose.msra.mxu0 0.0
    %1168 = vmatprep.subr.mxu0 0.0
    %1169 = vmatpush1.xpose.msra.mxu0 0.0
    %1170 = vmatprep.subr.mxu0 0.0
    %1171 = vmatpush1.xpose.msra.mxu0 0.0
    %1172 = vmatprep.subr.mxu0 0.0
    %1173 = vmatpush1.xpose.msra.mxu0 %v1140
    %1174 = vmatprep.subr.mxu0 0.0
    %1175 = vmatpush2.xpose.msra.mxu0 0.0
    %1176 = vmatprep.subr.mxu0 0.0
    %1177 = vmatpush2.xpose.msra.mxu0 0.0
    %1178 = vmatprep.subr.mxu0 0.0
    %1179 = vmatpush2.xpose.msra.mxu0 0.0
    %1180 = vmatprep.subr.mxu0 0.0
    %1181 = vmatpush2.xpose.msra.mxu0 0.0
    %1182 = vmatprep.subr.mxu0 0.0
    %1183 = vmatpush2.xpose.msra.mxu0 0.0
    %1184 = vmatprep.subr.mxu0 0.0
    %1185 = vmatpush2.xpose.msra.mxu0 0.0
    %1186 = vmatprep.subr.mxu0 0.0
    %1187 = vmatpush2.xpose.msra.mxu0 0.0
    %1188 = vmatprep.subr.mxu0 0.0
    %1189 = vmatpush2.xpose.msra.mxu0 0.0
    %1190 = vmatprep.subr.mxu0 0.0
    %1191 = vmatpush2.xpose.msra.mxu0 0.0
    %1192 = vmatprep.subr.mxu0 0.0
    %1193 = vmatpush2.xpose.msra.mxu0 0.0
    %1194 = vmatprep.subr.mxu0 0.0
    %1195 = vmatpush2.xpose.msra.mxu0 0.0
    %1196 = vmatprep.subr.mxu0 0.0
    %1197 = vmatpush2.xpose.msra.mxu0 0.0
    %1198 = vmatprep.subr.mxu0 0.0
    %1199 = vmatpush2.xpose.msra.mxu0 0.0
    %1200 = vmatprep.subr.mxu0 0.0
    %1201 = vmatpush2.xpose.msra.mxu0 0.0
    %1202 = vmatprep.subr.mxu0 0.0
    %1203 = vmatpush2.xpose.msra.mxu0 0.0
    %1204 = vmatprep.subr.mxu0 0.0
    %1205 = vmatpush2.xpose.msra.mxu0 0.0
    %1206 = vmatprep.mubr.f32.mxu0 0.0
    %1207 = vmatmul.mubr.f32.gmra.mxu0 %v1138
    %v1208 = vpop.f32.mrf.mxu0
    %v1209 = vadd.f32 0.0, %v1208
    %v1210 = vpop.f32.mrf.mxu0
    %1211 = vdwg.mxu0
    %1212 = vrot.lane.b32.xlu0 %v129, 72
    %v1213 = vpop.permute.xlu0 %1212
    %1214 = vrot.lane.b32.xlu0 %v125, 104
    %v1215 = vpop.permute.xlu0 %1214
    %v1216 = vsel %vm138, %v1213, 0
    %v1218 = vsel %vm138, %v1215, 0
    %1220 = vmatprep.subr.mxu0 0.0
    %1221 = vmatpush1.xpose.msra.mxu0 0.0
    %1222 = vmatprep.subr.mxu0 0.0
    %1223 = vmatpush1.xpose.msra.mxu0 0.0
    %1224 = vmatprep.subr.mxu0 0.0
    %1225 = vmatpush1.xpose.msra.mxu0 0.0
    %1226 = vmatprep.subr.mxu0 0.0
    %1227 = vmatpush1.xpose.msra.mxu0 0.0
    %1228 = vmatprep.subr.mxu0 0.0
    %1229 = vmatpush1.xpose.msra.mxu0 0.0
    %1230 = vmatprep.subr.mxu0 0.0
    %1231 = vmatpush1.xpose.msra.mxu0 0.0
    %1232 = vmatprep.subr.mxu0 0.0
    %1233 = vmatpush1.xpose.msra.mxu0 0.0
    %1234 = vmatprep.subr.mxu0 0.0
    %1235 = vmatpush1.xpose.msra.mxu0 0.0
    %1236 = vmatprep.subr.mxu0 0.0
    %1237 = vmatpush1.xpose.msra.mxu0 0.0
    %1238 = vmatprep.subr.mxu0 0.0
    %1239 = vmatpush1.xpose.msra.mxu0 0.0
    %1240 = vmatprep.subr.mxu0 0.0
    %1241 = vmatpush1.xpose.msra.mxu0 0.0
    %1242 = vmatprep.subr.mxu0 0.0
    %1243 = vmatpush1.xpose.msra.mxu0 0.0
    %1244 = vmatprep.subr.mxu0 0.0
    %1245 = vmatpush1.xpose.msra.mxu0 0.0
    %1246 = vmatprep.subr.mxu0 0.0
    %1247 = vmatpush1.xpose.msra.mxu0 0.0
    %1248 = vmatprep.subr.mxu0 0.0
    %1249 = vmatpush1.xpose.msra.mxu0 0.0
    %1250 = vmatprep.subr.mxu0 0.0
    %1251 = vmatpush1.xpose.msra.mxu0 %v1218
    %1252 = vmatprep.subr.mxu0 0.0
    %1253 = vmatpush2.xpose.msra.mxu0 0.0
    %1254 = vmatprep.subr.mxu0 0.0
    %1255 = vmatpush2.xpose.msra.mxu0 0.0
    %1256 = vmatprep.subr.mxu0 0.0
    %1257 = vmatpush2.xpose.msra.mxu0 0.0
    %1258 = vmatprep.subr.mxu0 0.0
    %1259 = vmatpush2.xpose.msra.mxu0 0.0
    %1260 = vmatprep.subr.mxu0 0.0
    %1261 = vmatpush2.xpose.msra.mxu0 0.0
    %1262 = vmatprep.subr.mxu0 0.0
    %1263 = vmatpush2.xpose.msra.mxu0 0.0
    %1264 = vmatprep.subr.mxu0 0.0
    %1265 = vmatpush2.xpose.msra.mxu0 0.0
    %1266 = vmatprep.subr.mxu0 0.0
    %1267 = vmatpush2.xpose.msra.mxu0 0.0
    %1268 = vmatprep.subr.mxu0 0.0
    %1269 = vmatpush2.xpose.msra.mxu0 0.0
    %1270 = vmatprep.subr.mxu0 0.0
    %1271 = vmatpush2.xpose.msra.mxu0 0.0
    %1272 = vmatprep.subr.mxu0 0.0
    %1273 = vmatpush2.xpose.msra.mxu0 0.0
    %1274 = vmatprep.subr.mxu0 0.0
    %1275 = vmatpush2.xpose.msra.mxu0 0.0
    %1276 = vmatprep.subr.mxu0 0.0
    %1277 = vmatpush2.xpose.msra.mxu0 0.0
    %1278 = vmatprep.subr.mxu0 0.0
    %1279 = vmatpush2.xpose.msra.mxu0 0.0
    %1280 = vmatprep.subr.mxu0 0.0
    %1281 = vmatpush2.xpose.msra.mxu0 0.0
    %1282 = vmatprep.subr.mxu0 0.0
    %1283 = vmatpush2.xpose.msra.mxu0 0.0
    %1284 = vmatprep.mubr.f32.mxu0 0.0
    %1285 = vmatmul.mubr.f32.gmra.mxu0 %v1216
    %v1286 = vpop.f32.mrf.mxu0
    %v1287 = vadd.f32 0.0, %v1286
    %v1288 = vpop.f32.mrf.mxu0
    %1289 = vdwg.mxu0
    %v1290 = vsel %vm293, %v1209, -1e+30
    %v1291 = vsel %vm293, %v1287, -1e+30
    %v1292 = vsel %vm138, %v1290, -inf
    %1293 = vmax.xlane.f32.xlu0 %v1292
    %v1294 = vpop.xlane.xlu0 %1293
    %v1295 = vsel %vm138, %v1291, -inf
    %1296 = vmax.xlane.f32.xlu0 %v1295
    %v1297 = vpop.xlane.xlu0 %1296
    %v1298 = vsub.f32 %v1290, %v1294
    %v1299 = vsub.f32 %v1291, %v1297
    %v1300 = vmul.f32 %v1298, 1.442695
    %v1301 = vpow.pop %v1300
    %v1302 = vmul.f32 %v1299, 1.442695
    %v1303 = vpow.pop %v1302
    %v1304 = vsel %vm138, %v1301, 0.0
    %1305 = vadd.xlane.f32.xlu0 %v1304
    %v1306 = vpop.xlane.xlu0 %1305
    %v1307 = vsel %vm138, %v1303, 0.0
    %1308 = vadd.xlane.f32.xlu0 %v1307
    %v1309 = vpop.xlane.xlu0 %1308
    %v1310 = vrcp.pop %v1306
    %v1311 = vrcp.pop %v1309
    %v1312 = vmul.f32 %v1301, %v1310
    %v1313 = vmul.f32 %v1303, %v1311
    %1314 = vrot.lane.b32.xlu0 %v120, 40
    %v1315 = vpop.permute.xlu0 %1314
    %v1318 = vsel %vm138, %v1312, 0
    %1320 = vmatprep.subr.mxu0 0.0
    %1321 = vmatpush1.msra.mxu0 0.0
    %1322 = vmatprep.subr.mxu0 0.0
    %1323 = vmatpush1.msra.mxu0 0.0
    %1324 = vmatprep.subr.mxu0 0.0
    %1325 = vmatpush1.msra.mxu0 0.0
    %1326 = vmatprep.subr.mxu0 0.0
    %1327 = vmatpush1.msra.mxu0 0.0
    %1328 = vmatprep.subr.mxu0 0.0
    %1329 = vmatpush1.msra.mxu0 0.0
    %1330 = vmatprep.subr.mxu0 0.0
    %1331 = vmatpush1.msra.mxu0 0.0
    %1332 = vmatprep.subr.mxu0 0.0
    %1333 = vmatpush1.msra.mxu0 0.0
    %1334 = vmatprep.subr.mxu0 0.0
    %1335 = vmatpush1.msra.mxu0 0.0
    %1336 = vmatprep.subr.mxu0 0.0
    %1337 = vmatpush1.msra.mxu0 0.0
    %1338 = vmatprep.subr.mxu0 0.0
    %1339 = vmatpush1.msra.mxu0 0.0
    %1340 = vmatprep.subr.mxu0 0.0
    %1341 = vmatpush1.msra.mxu0 0.0
    %1342 = vmatprep.subr.mxu0 0.0
    %1343 = vmatpush1.msra.mxu0 0.0
    %1344 = vmatprep.subr.mxu0 0.0
    %1345 = vmatpush1.msra.mxu0 0.0
    %1346 = vmatprep.subr.mxu0 0.0
    %1347 = vmatpush1.msra.mxu0 0.0
    %1348 = vmatprep.subr.mxu0 0.0
    %1349 = vmatpush1.msra.mxu0 0.0
    %1350 = vmatprep.subr.mxu0 0.0
    %1351 = vmatpush1.msra.mxu0 %v1315
    %1352 = vmatprep.subr.mxu0 0.0
    %1353 = vmatpush2.msra.mxu0 0.0
    %1354 = vmatprep.subr.mxu0 0.0
    %1355 = vmatpush2.msra.mxu0 0.0
    %1356 = vmatprep.subr.mxu0 0.0
    %1357 = vmatpush2.msra.mxu0 0.0
    %1358 = vmatprep.subr.mxu0 0.0
    %1359 = vmatpush2.msra.mxu0 0.0
    %1360 = vmatprep.subr.mxu0 0.0
    %1361 = vmatpush2.msra.mxu0 0.0
    %1362 = vmatprep.subr.mxu0 0.0
    %1363 = vmatpush2.msra.mxu0 0.0
    %1364 = vmatprep.subr.mxu0 0.0
    %1365 = vmatpush2.msra.mxu0 0.0
    %1366 = vmatprep.subr.mxu0 0.0
    %1367 = vmatpush2.msra.mxu0 0.0
    %1368 = vmatprep.subr.mxu0 0.0
    %1369 = vmatpush2.msra.mxu0 0.0
    %1370 = vmatprep.subr.mxu0 0.0
    %1371 = vmatpush2.msra.mxu0 0.0
    %1372 = vmatprep.subr.mxu0 0.0
    %1373 = vmatpush2.msra.mxu0 0.0
    %1374 = vmatprep.subr.mxu0 0.0
    %1375 = vmatpush2.msra.mxu0 0.0
    %1376 = vmatprep.subr.mxu0 0.0
    %1377 = vmatpush2.msra.mxu0 0.0
    %1378 = vmatprep.subr.mxu0 0.0
    %1379 = vmatpush2.msra.mxu0 0.0
    %1380 = vmatprep.subr.mxu0 0.0
    %1381 = vmatpush2.msra.mxu0 0.0
    %1382 = vmatprep.subr.mxu0 0.0
    %1383 = vmatpush2.msra.mxu0 0.0
    %1384 = vmatprep.mubr.f32.mxu0 0.0
    %1385 = vmatmul.mubr.f32.gmra.mxu0 %v1318
    %v1386 = vpop.f32.mrf.mxu0
    %v1387 = vadd.f32 0.0, %v1386
    %v1388 = vpop.f32.mrf.mxu0
    %1389 = vdwg.mxu0
    %1390 = vrot.lane.b32.xlu0 %v125, 40
    %v1391 = vpop.permute.xlu0 %1390
    %v1394 = vsel %vm138, %v1313, 0
    %1396 = vmatprep.subr.mxu0 0.0
    %1397 = vmatpush1.msra.mxu0 0.0
    %1398 = vmatprep.subr.mxu0 0.0
    %1399 = vmatpush1.msra.mxu0 0.0
    %1400 = vmatprep.subr.mxu0 0.0
    %1401 = vmatpush1.msra.mxu0 0.0
    %1402 = vmatprep.subr.mxu0 0.0
    %1403 = vmatpush1.msra.mxu0 0.0
    %1404 = vmatprep.subr.mxu0 0.0
    %1405 = vmatpush1.msra.mxu0 0.0
    %1406 = vmatprep.subr.mxu0 0.0
    %1407 = vmatpush1.msra.mxu0 0.0
    %1408 = vmatprep.subr.mxu0 0.0
    %1409 = vmatpush1.msra.mxu0 0.0
    %1410 = vmatprep.subr.mxu0 0.0
    %1411 = vmatpush1.msra.mxu0 0.0
    %1412 = vmatprep.subr.mxu0 0.0
    %1413 = vmatpush1.msra.mxu0 0.0
    %1414 = vmatprep.subr.mxu0 0.0
    %1415 = vmatpush1.msra.mxu0 0.0
    %1416 = vmatprep.subr.mxu0 0.0
    %1417 = vmatpush1.msra.mxu0 0.0
    %1418 = vmatprep.subr.mxu0 0.0
    %1419 = vmatpush1.msra.mxu0 0.0
    %1420 = vmatprep.subr.mxu0 0.0
    %1421 = vmatpush1.msra.mxu0 0.0
    %1422 = vmatprep.subr.mxu0 0.0
    %1423 = vmatpush1.msra.mxu0 0.0
    %1424 = vmatprep.subr.mxu0 0.0
    %1425 = vmatpush1.msra.mxu0 0.0
    %1426 = vmatprep.subr.mxu0 0.0
    %1427 = vmatpush1.msra.mxu0 %v1391
    %1428 = vmatprep.subr.mxu0 0.0
    %1429 = vmatpush2.msra.mxu0 0.0
    %1430 = vmatprep.subr.mxu0 0.0
    %1431 = vmatpush2.msra.mxu0 0.0
    %1432 = vmatprep.subr.mxu0 0.0
    %1433 = vmatpush2.msra.mxu0 0.0
    %1434 = vmatprep.subr.mxu0 0.0
    %1435 = vmatpush2.msra.mxu0 0.0
    %1436 = vmatprep.subr.mxu0 0.0
    %1437 = vmatpush2.msra.mxu0 0.0
    %1438 = vmatprep.subr.mxu0 0.0
    %1439 = vmatpush2.msra.mxu0 0.0
    %1440 = vmatprep.subr.mxu0 0.0
    %1441 = vmatpush2.msra.mxu0 0.0
    %1442 = vmatprep.subr.mxu0 0.0
    %1443 = vmatpush2.msra.mxu0 0.0
    %1444 = vmatprep.subr.mxu0 0.0
    %1445 = vmatpush2.msra.mxu0 0.0
    %1446 = vmatprep.subr.mxu0 0.0
    %1447 = vmatpush2.msra.mxu0 0.0
    %1448 = vmatprep.subr.mxu0 0.0
    %1449 = vmatpush2.msra.mxu0 0.0
    %1450 = vmatprep.subr.mxu0 0.0
    %1451 = vmatpush2.msra.mxu0 0.0
    %1452 = vmatprep.subr.mxu0 0.0
    %1453 = vmatpush2.msra.mxu0 0.0
    %1454 = vmatprep.subr.mxu0 0.0
    %1455 = vmatpush2.msra.mxu0 0.0
    %1456 = vmatprep.subr.mxu0 0.0
    %1457 = vmatpush2.msra.mxu0 0.0
    %1458 = vmatprep.subr.mxu0 0.0
    %1459 = vmatpush2.msra.mxu0 0.0
    %1460 = vmatprep.mubr.f32.mxu0 0.0
    %1461 = vmatmul.mubr.f32.gmra.mxu0 %v1394
    %v1462 = vpop.f32.mrf.mxu0
    %v1463 = vadd.f32 0.0, %v1462
    %v1464 = vpop.f32.mrf.mxu0
    %1465 = vdwg.mxu0
    %1468 = vrot.lane.b32.xlu0 %v723, 8
    %v1469 = vpop.permute.xlu0 %1468
    %1470 = vrot.lane.b32.xlu0 %v799, 8
    %v1471 = vpop.permute.xlu0 %1470
    %1476 = vrot.lane.b32.xlu0 %v1055, 16
    %v1477 = vpop.permute.xlu0 %1476
    %1478 = vrot.lane.b32.xlu0 %v1131, 16
    %v1479 = vpop.permute.xlu0 %1478
    %1484 = vrot.lane.b32.xlu0 %v1387, 24
    %v1485 = vpop.permute.xlu0 %1484
    %1486 = vrot.lane.b32.xlu0 %v1463, 24
    %v1487 = vpop.permute.xlu0 %1486
    %v1490 = vsel %vm138, %v391, %v1469
    %v1491 = vsel %vm138, %v467, %v1471
    %vm1492 = vcmask 130048
    %v1493 = vsel %vm1492, %v1490, %v1477
    %v1494 = vsel %vm1492, %v1491, %v1479
    %vm1495 = vcmask 195584
    %v1496 = vsel %vm1495, %v1493, %v1485
    %v1497 = vsel %vm1495, %v1494, %v1487
    %1498 = vst.msk [vmem:[#allocation7] sm:$0xff] %vm46, %v1496
    %1499 = vst.msk [vmem:[#allocation7 + $0x8] sm:$0xff] %vm46, %v1497
    // Predicated region
    $region18: #{tpu_custom_call.1} parent=1 // pred_check
      _
    $region19: #{tpu_custom_call.1} parent=1 // pred_check_branch
      %1501 = sbr.rel (0) target = $region21
    $region20: #{tpu_custom_call.1} parent=1 // pred_region
      %s1503 = ssub.s32 256, 256
      %1504 = vsyncadd [#allocation4], %s1503
      %s1505 = sshll.u32 [#allocation7], 4
      %s1506 = int_to_ptr.vmem [resolvable:$true] %s1505
      %1511 = dma.vmem_to_hbm [thread:$0]  %s1506, 256, %s2, [#allocation4], 128, 128, 8
    $region21: #{tpu_custom_call.1} parent=1 // pred_fallthru
      _
    // Predicated region
    $region22: #{tpu_custom_call.1} parent=1 // pred_check
      _
    $region23: #{tpu_custom_call.1} parent=1 // pred_check_branch
      %1513 = sbr.rel (0) target = $region25
    $region24: #{tpu_custom_call.1} parent=1 // pred_region
      %1514 = dma.done [#allocation4], 256
    $region25: #{tpu_custom_call.1} parent=1 // pred_fallthru
      _
    %1515 = vsyncpa [#allocation3], 1
    %1516 = vsyncpa [#allocation6], 1
    %1517 = vsyncpa [#allocation4], 1

</llo_original>
